<compile_context>
chip_gen: v7x
topology: tpu7x:2x2x1
jax: 0.10.0
libtpu: 0.0.40
codegen_flags: <defaults>
</compile_context>

<pallas_src>
import jax
import jax.numpy as jnp
from jax.experimental import pallas as pl
from jax.experimental.pallas import tpu as pltpu


def _leaky_relu(x, slope=0.01):
    return jnp.where(x > 0, x, slope * x)


def wcompute_kernel(x_ref, widf_ref, sel_ref, selt_ref,
                    w1_ref, w2_ref, w3_ref, w4_ref,
                    bcat_ref, wl_ref, scalars_ref, out_ref):
    btile, N, F = x_ref.shape
    NN = N * N
    S = btile * NN
    gamma = scalars_ref[0]        # CAM gamma        (SMEM scalar)
    bl = scalars_ref[1]           # conv2d_last bias (SMEM scalar)

    # ---- pairwise |x_i - x_j| slab, whole btile block at once --------------
    # (btile, N, N, F) -> (S, F): leading-dim collapse only (layout-preserving
    # for N multiple of 8); no per-sample concatenate.
    xb = x_ref[...]                                              # (btile, N, F)
    dd = jnp.abs(xb[:, :, None, :] - xb[:, None, :, :]).reshape(S, F)

    # ---- conv2d_1..4 (+ folded BN) + leaky_relu, channels-on-sublanes ------
    c1 = w1_ref.shape[0]
    c2 = w2_ref.shape[0]
    c3 = w3_ref.shape[0]
    c4 = w4_ref.shape[0]
    b1 = bcat_ref[0:c1, :]
    b2 = bcat_ref[c1:c1 + c2, :]
    b3 = bcat_ref[c1 + c2:c1 + c2 + c3, :]
    b4 = bcat_ref[c1 + c2 + c3:c1 + c2 + c3 + c4, :]

    # A @ dd^T form: the big operand keeps its contracting dim on lanes; the
    # MXU transposing weight-push handles it.  TODO(synk): if the Mosaic dump
    # shows a materialized transpose of dd here, build dd channel-major.
    h = jax.lax.dot_general(w1_ref[...], dd, (((1,), (1,)), ((), ())),
                            preferred_element_type=jnp.float32)      # (C1, S)
    h = _leaky_relu(h + b1)
    h = _leaky_relu(jnp.dot(w2_ref[...], h,
                            preferred_element_type=jnp.float32) + b2)
    h = _leaky_relu(jnp.dot(w3_ref[...], h,
                            preferred_element_type=jnp.float32) + b3)
    h = _leaky_relu(jnp.dot(w4_ref[...], h,
                            preferred_element_type=jnp.float32) + b4)  # (C4, S)
    # TODO(synk): optional bf16 matmul-operand cast for v6e/v7x MXU rate once
    # channel widths grow past 16; kept f32 here (gain is negligible at C<=16).

    # ---- CAM_Module (channel attention): only part that stays per-sample ---
    cam_parts = []
    for b in range(btile):
        hb = h[:, b * NN:(b + 1) * NN]                           # (C4, NN) static slice
        energy = jax.lax.dot_general(hb, hb, (((1,), (1,)), ((), ())),
                                     preferred_element_type=jnp.float32)  # (C,C)
        energy_new = jnp.max(energy, axis=-1, keepdims=True) - energy
        e = jnp.exp(energy_new - jnp.max(energy_new, axis=-1, keepdims=True))
        attn = e / jnp.sum(e, axis=-1, keepdims=True)            # exact divide
        cam_parts.append(jnp.dot(attn, hb, preferred_element_type=jnp.float32))
    cam = cam_parts[0] if btile == 1 else jnp.concatenate(cam_parts, axis=1)
    h = gamma * cam + h                                          # (C4, S)

    # ---- conv2d_last (nf -> 1) + masked softmax, batched over the slab -----
    logits = jnp.dot(wl_ref[...], h, preferred_element_type=jnp.float32) + bl  # (1, S)
    m = jnp.max(logits, axis=-1, keepdims=True)                  # slab max (shift)
    widf = widf_ref[0]                                           # (1, S)
    ex = jnp.exp(logits - m) * (1.0 - widf)                      # masked entries -> 0.0
    # Per-(sample,row) sums over j via one block-diagonal selector matmul.
    rowsum = jnp.dot(ex, sel_ref[...], preferred_element_type=jnp.float32)     # (1, R)
    inv = 1.0 / rowsum                                           # exact (tiny: R lanes)
    inv_full = jnp.dot(inv, selt_ref[...], preferred_element_type=jnp.float32)  # (1, S)
    out_ref[0] = ex * inv_full                                   # one lane-dense store
    # NOTE: a fully-masked row would give rowsum == 0 -> NaN; W_id is the
    # identity in this module, so that row never occurs (matches torch usage).


def _default_btile(B, NN):
    """Pick btile: S = btile*NN ~ 1024, divisor of B, grid >= 2 on v7x."""
    target = max(1, pl.cdiv(1024, NN))
    btile = min(B, target)
    try:
        kind = jax.devices()[0].device_kind.lower()
    except Exception:
        kind = ""
    if ("v7" in kind or "7x" in kind) and B >= 2:
        btile = min(btile, max(1, B // 2))   # keep both v7x TensorCores busy
    btile = max(1, btile)
    while B % btile:
        btile -= 1
    return btile


def wcompute(x, w_id, layers, wl, bl, gamma, *, btile=None):
    """Pallas forward of Wcompute (operator='J2', activation='softmax', eval BN)."""
    B, N, F = x.shape
    NN = N * N
    wid = w_id.reshape(B, N, N).astype(jnp.float32)
    (w1, b1), (w2, b2), (w3, b3), (w4, b4) = layers

    if btile is None:
        btile = _default_btile(B, NN)
    assert B % btile == 0, (B, btile)
    G = B // btile
    S = btile * NN          # lane width of the per-step slab
    R = btile * N           # number of softmax rows per step
    # TODO(synk): very large N needs a spatially tiled two-pass CAM
    # (accumulate the (C,C) energy across row tiles); this kernel keeps the
    # full (C, btile*N*N) slab resident in VMEM (KiB-scale at these sizes).

    wid_flat = wid.reshape(G, 1, S)                      # lane-dense mask
    bcat = jnp.concatenate([b1, b2, b3, b4], axis=0)     # packed biases (Ctot, 1)
    scalars = jnp.stack([jnp.asarray(gamma, jnp.float32),
                         jnp.asarray(bl, jnp.float32)])  # (2,) -> SMEM

    # Block-diagonal selector: sel[s, r] = 1.0 iff s // N == r (row of entry s).
    sel = (jnp.arange(S, dtype=jnp.int32)[:, None] // N ==
           jnp.arange(R, dtype=jnp.int32)[None, :]).astype(jnp.float32)  # (S, R)
    selt = sel.T                                                          # (R, S)

    def rep(a):                                   # replicated (constant) spec
        return pl.BlockSpec(a.shape, lambda g, nd=a.ndim: (0,) * nd)

    grid_spec = pltpu.PrefetchScalarGridSpec(
        num_scalar_prefetch=0,
        grid=(G,),
        in_specs=[
            pl.BlockSpec((btile, N, F), lambda g: (g, 0, 0)),      # x
            pl.BlockSpec((1, 1, S), lambda g: (g, 0, 0)),          # W_id (flat, lane-dense)
            rep(sel), rep(selt),
            rep(w1), rep(w2), rep(w3), rep(w4),
            rep(bcat), rep(wl),
            pl.BlockSpec(memory_space=pltpu.MemorySpace.SMEM),     # [gamma, bl]
        ],
        out_specs=pl.BlockSpec((1, 1, S), lambda g: (g, 0, 0)),    # lane-dense output
    )
    out = pl.pallas_call(
        wcompute_kernel,
        out_shape=jax.ShapeDtypeStruct((G, 1, S), jnp.float32),
        grid_spec=grid_spec,
        compiler_params=pltpu.CompilerParams(
            dimension_semantics=("parallel",)),
    )(x, wid_flat, sel, selt, w1, w2, w3, w4, bcat, wl, scalars)

    sm = out.reshape(B, N, N)
    # operator == 'J2': concat([W_id, W_new], dim=3) — wrapper-side, so the
    # identity map never round-trips through the kernel's HBM writeback.
    return jnp.stack([wid, sm], axis=-1)


def init_params(key, input_features, nf, ratio=(2, 2, 1, 1), num_operators=1):
    """Deterministic synthetic parameters; BatchNorm (eval) folded into convs."""
    dims = [input_features, nf * ratio[0], nf * ratio[1], nf * ratio[2], nf * ratio[3]]
    keys = jax.random.split(key, 32)
    ki = iter(keys)
    eps = 1e-5
    layers = []
    for li in range(4):
        cin, cout = dims[li], dims[li + 1]
        w = jax.random.normal(next(ki), (cout, cin), jnp.float32) / jnp.sqrt(cin)
        b = jax.random.normal(next(ki), (cout,), jnp.float32) * 0.1
        bn_gamma = jax.random.uniform(next(ki), (cout,), jnp.float32, 0.5, 1.5)
        bn_beta = jax.random.normal(next(ki), (cout,), jnp.float32) * 0.1
        bn_mean = jax.random.normal(next(ki), (cout,), jnp.float32) * 0.1
        bn_var = jax.random.uniform(next(ki), (cout,), jnp.float32, 0.5, 1.5)
        scale = bn_gamma / jnp.sqrt(bn_var + eps)
        w_eff = w * scale[:, None]                        # (cout, cin)
        b_eff = ((b - bn_mean) * scale + bn_beta).reshape(cout, 1)
        layers.append((w_eff, b_eff))
    cin = dims[4]
    # conv2d_last: nf -> num_operators (=1); stored as a (1, nf) row vector.
    wl = jax.random.normal(next(ki), (1, cin), jnp.float32) / jnp.sqrt(cin)
    bl = jnp.asarray(jax.random.normal(next(ki), ()) * 0.1, jnp.float32)
    # CAM gamma: torch inits to 0 (identity); use 0.5 to exercise the attention path.
    gamma = jnp.float32(0.5)
    return layers, wl, bl, gamma


def wcompute_ref(x, w_id, layers, wl, bl, gamma):
    """Pure-JAX reference of the same forward pass (for verification)."""
    B, N, F = x.shape
    wid = w_id.reshape(B, N, N)
    diff = jnp.abs(x[:, :, None, :] - x[:, None, :, :])        # (B, N, N, F)
    h = diff.reshape(B, N * N, F)
    for (w, b) in layers:                                       # w: (Cout, Cin)
        h = h @ w.T + b[:, 0]
        h = jnp.where(h > 0, h, 0.01 * h)
    energy = jnp.einsum('bsc,bsd->bcd', h, h)
    energy_new = jnp.max(energy, -1, keepdims=True) - energy
    attn = jax.nn.softmax(energy_new, axis=-1)
    cam = jnp.einsum('bcd,bsd->bsc', attn, h)
    h = gamma * cam + h
    logits = (jnp.einsum('bsc,c->bs', h, wl[0]) + bl).reshape(B, N, N)
    masked = logits - wid * 1e8
    sm = jax.nn.softmax(masked, axis=2)
    return jnp.stack([wid, sm], axis=-1)


if __name__ == "__main__":
    key = jax.random.PRNGKey(0)
    kx, kp = jax.random.split(key)

    B, N, input_features, nf = 2, 8, 16, 8
    x = jax.random.normal(kx, (B, N, input_features), jnp.float32)
    w_id = jnp.broadcast_to(
        jnp.eye(N, dtype=jnp.float32)[None, :, :, None], (B, N, N, 1))

    layers, wl, bl, gamma = init_params(kp, input_features, nf)

    out = jax.block_until_ready(wcompute(x, w_id, layers, wl, bl, gamma))
    ref = wcompute_ref(x, w_id, layers, wl, bl, gamma)

    assert out.shape == (B, N, N, 2), out.shape
    err = float(jnp.max(jnp.abs(out - ref)))
    assert jnp.allclose(out, ref, rtol=1e-3, atol=1e-3), err
    print("KERNEL_OK")
</pallas_src>

<mosaic_0001>
module attributes {stable_mosaic.version = 11 : i64} {
  func.func @wcompute_kernel(%arg0: i32, %arg1: memref<2x8x16xf32, #tpu.memory_space<vmem>>, %arg2: memref<1x1x128xf32, #tpu.memory_space<vmem>>, %arg3: memref<128x16xf32, #tpu.memory_space<vmem>>, %arg4: memref<16x128xf32, #tpu.memory_space<vmem>>, %arg5: memref<16x16xf32, #tpu.memory_space<vmem>>, %arg6: memref<16x16xf32, #tpu.memory_space<vmem>>, %arg7: memref<8x16xf32, #tpu.memory_space<vmem>>, %arg8: memref<8x8xf32, #tpu.memory_space<vmem>>, %arg9: memref<48x1xf32, #tpu.memory_space<vmem>>, %arg10: memref<1x8xf32, #tpu.memory_space<vmem>>, %arg11: memref<2xf32, #tpu.memory_space<smem>>, %arg12: memref<1x1x128xf32, #tpu.memory_space<vmem>>) attributes {dimension_semantics = [#tpu.dimension_semantics<parallel>], iteration_bounds = array<i64: 1>, scalar_prefetch = 0 : i64, scratch_operands = 0 : i64, tpu.core_type = #tpu.core_type<tc>, window_params = [{transform_indices = @transform_0, window_bounds = array<i64: 2, 8, 16>}, {transform_indices = @transform_1, window_bounds = array<i64: 1, 1, 128>}, {pipeline_mode = #tpu.pipeline_mode<synchronous>, transform_indices = @transform_2, window_bounds = array<i64: 128, 16>}, {pipeline_mode = #tpu.pipeline_mode<synchronous>, transform_indices = @transform_3, window_bounds = array<i64: 16, 128>}, {pipeline_mode = #tpu.pipeline_mode<synchronous>, transform_indices = @transform_4, window_bounds = array<i64: 16, 16>}, {pipeline_mode = #tpu.pipeline_mode<synchronous>, transform_indices = @transform_5, window_bounds = array<i64: 16, 16>}, {pipeline_mode = #tpu.pipeline_mode<synchronous>, transform_indices = @transform_6, window_bounds = array<i64: 8, 16>}, {pipeline_mode = #tpu.pipeline_mode<synchronous>, transform_indices = @transform_7, window_bounds = array<i64: 8, 8>}, {pipeline_mode = #tpu.pipeline_mode<synchronous>, transform_indices = @transform_8, window_bounds = array<i64: 48, 1>}, {pipeline_mode = #tpu.pipeline_mode<synchronous>, transform_indices = @transform_9, window_bounds = array<i64: 1, 8>}, {transform_indices = @transform_10, window_bounds = array<i64: 2>}, {transform_indices = @transform_11, window_bounds = array<i64: 1, 1, 128>}]} {
    %c0 = arith.constant 0 : index
    %0 = memref.load %arg11[%c0] : memref<2xf32, #tpu.memory_space<smem>>
    %c1 = arith.constant 1 : index
    %1 = memref.load %arg11[%c1] : memref<2xf32, #tpu.memory_space<smem>>
    %c0_0 = arith.constant 0 : index
    %c0_1 = arith.constant 0 : index
    %c0_2 = arith.constant 0 : index
    %2 = vector.load %arg1[%c0_0, %c0_1, %c0_2] : memref<2x8x16xf32, #tpu.memory_space<vmem>>, vector<2x8x16xf32>
    %3 = vector.shape_cast %2 : vector<2x8x16xf32> to vector<2x8x1x16xf32>
    %4 = vector.shape_cast %2 : vector<2x8x16xf32> to vector<2x1x8x16xf32>
    %5 = vector.broadcast %3 : vector<2x8x1x16xf32> to vector<2x8x8x16xf32>
    %6 = vector.broadcast %4 : vector<2x1x8x16xf32> to vector<2x8x8x16xf32>
    %7 = arith.subf %5, %6 : vector<2x8x8x16xf32>
    %8 = math.absf %7 : vector<2x8x8x16xf32>
    %9 = vector.shape_cast %8 : vector<2x8x8x16xf32> to vector<128x16xf32>
    %c0_3 = arith.constant 0 : index
    %c0_4 = arith.constant 0 : index
    %10 = vector.load %arg9[%c0_3, %c0_4] : memref<48x1xf32, #tpu.memory_space<vmem>>, vector<16x1xf32>
    %c16 = arith.constant 16 : index
    %c0_5 = arith.constant 0 : index
    %11 = vector.load %arg9[%c16, %c0_5] : memref<48x1xf32, #tpu.memory_space<vmem>>, vector<16x1xf32>
    %c32 = arith.constant 32 : index
    %c0_6 = arith.constant 0 : index
    %12 = vector.load %arg9[%c32, %c0_6] : memref<48x1xf32, #tpu.memory_space<vmem>>, vector<8x1xf32>
    %c40 = arith.constant 40 : index
    %c0_7 = arith.constant 0 : index
    %13 = vector.load %arg9[%c40, %c0_7] : memref<48x1xf32, #tpu.memory_space<vmem>>, vector<8x1xf32>
    %c0_8 = arith.constant 0 : index
    %c0_9 = arith.constant 0 : index
    %14 = vector.load %arg5[%c0_8, %c0_9] : memref<16x16xf32, #tpu.memory_space<vmem>>, vector<16x16xf32>
    %cst = arith.constant dense<0.000000e+00> : vector<16x128xf32>
    %15 = tpu.matmul %14, %9, %cst {dimension_numbers = #tpu.dot_dimension_numbers<[1], [1], [0], [0], [0, 0, 1, 0], [], []>} : vector<16x16xf32>, vector<128x16xf32>, vector<16x128xf32> -> vector<16x128xf32>
    %16 = vector.broadcast %10 : vector<16x1xf32> to vector<16x128xf32>
    %17 = arith.addf %15, %16 : vector<16x128xf32>
    %cst_10 = arith.constant 0.000000e+00 : f32
    %18 = vector.broadcast %cst_10 : f32 to vector<16x128xf32>
    %19 = arith.cmpf ogt, %17, %18 : vector<16x128xf32>
    %cst_11 = arith.constant 0.00999999977 : f32
    %20 = vector.broadcast %cst_11 : f32 to vector<16x128xf32>
    %21 = arith.mulf %20, %17 : vector<16x128xf32>
    %22 = arith.select %19, %17, %21 : vector<16x128xi1>, vector<16x128xf32>
    %c0_12 = arith.constant 0 : index
    %c0_13 = arith.constant 0 : index
    %23 = vector.load %arg6[%c0_12, %c0_13] : memref<16x16xf32, #tpu.memory_space<vmem>>, vector<16x16xf32>
    %cst_14 = arith.constant dense<0.000000e+00> : vector<16x128xf32>
    %24 = tpu.matmul %23, %22, %cst_14 {dimension_numbers = #tpu.dot_dimension_numbers<[1], [0], [0], [1], [0, 0, 1, 1], [], []>} : vector<16x16xf32>, vector<16x128xf32>, vector<16x128xf32> -> vector<16x128xf32>
    %25 = vector.broadcast %11 : vector<16x1xf32> to vector<16x128xf32>
    %26 = arith.addf %24, %25 : vector<16x128xf32>
    %cst_15 = arith.constant 0.000000e+00 : f32
    %27 = vector.broadcast %cst_15 : f32 to vector<16x128xf32>
    %28 = arith.cmpf ogt, %26, %27 : vector<16x128xf32>
    %cst_16 = arith.constant 0.00999999977 : f32
    %29 = vector.broadcast %cst_16 : f32 to vector<16x128xf32>
    %30 = arith.mulf %29, %26 : vector<16x128xf32>
    %31 = arith.select %28, %26, %30 : vector<16x128xi1>, vector<16x128xf32>
    %c0_17 = arith.constant 0 : index
    %c0_18 = arith.constant 0 : index
    %32 = vector.load %arg7[%c0_17, %c0_18] : memref<8x16xf32, #tpu.memory_space<vmem>>, vector<8x16xf32>
    %cst_19 = arith.constant dense<0.000000e+00> : vector<8x128xf32>
    %33 = tpu.matmul %32, %31, %cst_19 {dimension_numbers = #tpu.dot_dimension_numbers<[1], [0], [0], [1], [0, 0, 1, 1], [], []>} : vector<8x16xf32>, vector<16x128xf32>, vector<8x128xf32> -> vector<8x128xf32>
    %34 = vector.broadcast %12 : vector<8x1xf32> to vector<8x128xf32>
    %35 = arith.addf %33, %34 : vector<8x128xf32>
    %cst_20 = arith.constant 0.000000e+00 : f32
    %36 = vector.broadcast %cst_20 : f32 to vector<8x128xf32>
    %37 = arith.cmpf ogt, %35, %36 : vector<8x128xf32>
    %cst_21 = arith.constant 0.00999999977 : f32
    %38 = vector.broadcast %cst_21 : f32 to vector<8x128xf32>
    %39 = arith.mulf %38, %35 : vector<8x128xf32>
    %40 = arith.select %37, %35, %39 : vector<8x128xi1>, vector<8x128xf32>
    %c0_22 = arith.constant 0 : index
    %c0_23 = arith.constant 0 : index
    %41 = vector.load %arg8[%c0_22, %c0_23] : memref<8x8xf32, #tpu.memory_space<vmem>>, vector<8x8xf32>
    %cst_24 = arith.constant dense<0.000000e+00> : vector<8x128xf32>
    %42 = tpu.matmul %41, %40, %cst_24 {dimension_numbers = #tpu.dot_dimension_numbers<[1], [0], [0], [1], [0, 0, 1, 1], [], []>} : vector<8x8xf32>, vector<8x128xf32>, vector<8x128xf32> -> vector<8x128xf32>
    %43 = vector.broadcast %13 : vector<8x1xf32> to vector<8x128xf32>
    %44 = arith.addf %42, %43 : vector<8x128xf32>
    %cst_25 = arith.constant 0.000000e+00 : f32
    %45 = vector.broadcast %cst_25 : f32 to vector<8x128xf32>
    %46 = arith.cmpf ogt, %44, %45 : vector<8x128xf32>
    %cst_26 = arith.constant 0.00999999977 : f32
    %47 = vector.broadcast %cst_26 : f32 to vector<8x128xf32>
    %48 = arith.mulf %47, %44 : vector<8x128xf32>
    %49 = arith.select %46, %44, %48 : vector<8x128xi1>, vector<8x128xf32>
    %50 = vector.extract_strided_slice %49 {offsets = [0, 0], sizes = [8, 64], strides = [1, 1]} : vector<8x128xf32> to vector<8x64xf32>
    %cst_27 = arith.constant dense<0.000000e+00> : vector<8x8xf32>
    %51 = tpu.matmul %50, %50, %cst_27 {dimension_numbers = #tpu.dot_dimension_numbers<[1], [1], [0], [0], [0, 0, 1, 0], [], []>} : vector<8x64xf32>, vector<8x64xf32>, vector<8x8xf32> -> vector<8x8xf32>
    %cst_28 = arith.constant dense<0xFF800000> : vector<8xf32>
    %52 = vector.multi_reduction <maximumf>, %51, %cst_28 [1] : vector<8x8xf32> to vector<8xf32>
    %53 = vector.shape_cast %52 : vector<8xf32> to vector<8x1xf32>
    %54 = vector.broadcast %53 : vector<8x1xf32> to vector<8x8xf32>
    %55 = arith.subf %54, %51 : vector<8x8xf32>
    %cst_29 = arith.constant dense<0xFF800000> : vector<8xf32>
    %56 = vector.multi_reduction <maximumf>, %55, %cst_29 [1] : vector<8x8xf32> to vector<8xf32>
    %57 = vector.shape_cast %56 : vector<8xf32> to vector<8x1xf32>
    %58 = vector.broadcast %57 : vector<8x1xf32> to vector<8x8xf32>
    %59 = arith.subf %55, %58 : vector<8x8xf32>
    %60 = math.exp %59 : vector<8x8xf32>
    %cst_30 = arith.constant dense<0.000000e+00> : vector<8xf32>
    %61 = vector.multi_reduction <add>, %60, %cst_30 [1] : vector<8x8xf32> to vector<8xf32>
    %62 = vector.shape_cast %61 : vector<8xf32> to vector<8x1xf32>
    %63 = vector.broadcast %62 : vector<8x1xf32> to vector<8x8xf32>
    %64 = arith.divf %60, %63 : vector<8x8xf32>
    %cst_31 = arith.constant dense<0.000000e+00> : vector<8x64xf32>
    %65 = tpu.matmul %64, %50, %cst_31 {dimension_numbers = #tpu.dot_dimension_numbers<[1], [0], [0], [1], [0, 0, 1, 1], [], []>} : vector<8x8xf32>, vector<8x64xf32>, vector<8x64xf32> -> vector<8x64xf32>
    %66 = vector.extract_strided_slice %49 {offsets = [0, 64], sizes = [8, 64], strides = [1, 1]} : vector<8x128xf32> to vector<8x64xf32>
    %cst_32 = arith.constant dense<0.000000e+00> : vector<8x8xf32>
    %67 = tpu.matmul %66, %66, %cst_32 {dimension_numbers = #tpu.dot_dimension_numbers<[1], [1], [0], [0], [0, 0, 1, 0], [], []>} : vector<8x64xf32>, vector<8x64xf32>, vector<8x8xf32> -> vector<8x8xf32>
    %cst_33 = arith.constant dense<0xFF800000> : vector<8xf32>
    %68 = vector.multi_reduction <maximumf>, %67, %cst_33 [1] : vector<8x8xf32> to vector<8xf32>
    %69 = vector.shape_cast %68 : vector<8xf32> to vector<8x1xf32>
    %70 = vector.broadcast %69 : vector<8x1xf32> to vector<8x8xf32>
    %71 = arith.subf %70, %67 : vector<8x8xf32>
    %cst_34 = arith.constant dense<0xFF800000> : vector<8xf32>
    %72 = vector.multi_reduction <maximumf>, %71, %cst_34 [1] : vector<8x8xf32> to vector<8xf32>
    %73 = vector.shape_cast %72 : vector<8xf32> to vector<8x1xf32>
    %74 = vector.broadcast %73 : vector<8x1xf32> to vector<8x8xf32>
    %75 = arith.subf %71, %74 : vector<8x8xf32>
    %76 = math.exp %75 : vector<8x8xf32>
    %cst_35 = arith.constant dense<0.000000e+00> : vector<8xf32>
    %77 = vector.multi_reduction <add>, %76, %cst_35 [1] : vector<8x8xf32> to vector<8xf32>
    %78 = vector.shape_cast %77 : vector<8xf32> to vector<8x1xf32>
    %79 = vector.broadcast %78 : vector<8x1xf32> to vector<8x8xf32>
    %80 = arith.divf %76, %79 : vector<8x8xf32>
    %cst_36 = arith.constant dense<0.000000e+00> : vector<8x64xf32>
    %81 = tpu.matmul %80, %66, %cst_36 {dimension_numbers = #tpu.dot_dimension_numbers<[1], [0], [0], [1], [0, 0, 1, 1], [], []>} : vector<8x8xf32>, vector<8x64xf32>, vector<8x64xf32> -> vector<8x64xf32>
    %82 = tpu.concatenate %65, %81 in 1 : vector<8x64xf32>, vector<8x64xf32> -> vector<8x128xf32>
    %83 = vector.broadcast %0 : f32 to vector<8x128xf32>
    %84 = arith.mulf %83, %82 : vector<8x128xf32>
    %85 = arith.addf %84, %49 : vector<8x128xf32>
    %c0_37 = arith.constant 0 : index
    %c0_38 = arith.constant 0 : index
    %86 = vector.load %arg10[%c0_37, %c0_38] : memref<1x8xf32, #tpu.memory_space<vmem>>, vector<1x8xf32>
    %cst_39 = arith.constant dense<0.000000e+00> : vector<1x128xf32>
    %87 = tpu.matmul %86, %85, %cst_39 {dimension_numbers = #tpu.dot_dimension_numbers<[1], [0], [0], [1], [0, 0, 1, 1], [], []>} : vector<1x8xf32>, vector<8x128xf32>, vector<1x128xf32> -> vector<1x128xf32>
    %88 = vector.broadcast %1 : f32 to vector<1x128xf32>
    %89 = arith.addf %87, %88 : vector<1x128xf32>
    %cst_40 = arith.constant dense<0xFF800000> : vector<1xf32>
    %90 = vector.multi_reduction <maximumf>, %89, %cst_40 [1] : vector<1x128xf32> to vector<1xf32>
    %91 = vector.shape_cast %90 : vector<1xf32> to vector<1x1xf32>
    %c0_41 = arith.constant 0 : index
    %c0_42 = arith.constant 0 : index
    %c0_43 = arith.constant 0 : index
    %92 = vector.load %arg2[%c0_41, %c0_42, %c0_43] : memref<1x1x128xf32, #tpu.memory_space<vmem>>, vector<1x1x128xf32>
    %93 = vector.shape_cast %92 : vector<1x1x128xf32> to vector<1x128xf32>
    %94 = vector.broadcast %91 : vector<1x1xf32> to vector<1x128xf32>
    %95 = arith.subf %89, %94 : vector<1x128xf32>
    %96 = math.exp %95 : vector<1x128xf32>
    %cst_44 = arith.constant 1.000000e+00 : f32
    %97 = vector.broadcast %cst_44 : f32 to vector<1x128xf32>
    %98 = arith.subf %97, %93 : vector<1x128xf32>
    %99 = arith.mulf %96, %98 : vector<1x128xf32>
    %c0_45 = arith.constant 0 : index
    %c0_46 = arith.constant 0 : index
    %100 = vector.load %arg3[%c0_45, %c0_46] : memref<128x16xf32, #tpu.memory_space<vmem>>, vector<128x16xf32>
    %cst_47 = arith.constant dense<0.000000e+00> : vector<1x16xf32>
    %101 = tpu.matmul %99, %100, %cst_47 {dimension_numbers = #tpu.dot_dimension_numbers<[1], [0], [0], [1], [0, 0, 1, 1], [], []>} : vector<1x128xf32>, vector<128x16xf32>, vector<1x16xf32> -> vector<1x16xf32>
    %cst_48 = arith.constant 1.000000e+00 : f32
    %102 = vector.broadcast %cst_48 : f32 to vector<1x16xf32>
    %103 = arith.divf %102, %101 : vector<1x16xf32>
    %c0_49 = arith.constant 0 : index
    %c0_50 = arith.constant 0 : index
    %104 = vector.load %arg4[%c0_49, %c0_50] : memref<16x128xf32, #tpu.memory_space<vmem>>, vector<16x128xf32>
    %cst_51 = arith.constant dense<0.000000e+00> : vector<1x128xf32>
    %105 = tpu.matmul %103, %104, %cst_51 {dimension_numbers = #tpu.dot_dimension_numbers<[1], [0], [0], [1], [0, 0, 1, 1], [], []>} : vector<1x16xf32>, vector<16x128xf32>, vector<1x128xf32> -> vector<1x128xf32>
    %106 = arith.mulf %99, %105 : vector<1x128xf32>
    %c0_52 = arith.constant 0 : index
    %c0_53 = arith.constant 0 : index
    %c0_54 = arith.constant 0 : index
    %107 = vector.load %arg12[%c0_52, %c0_53, %c0_54] : memref<1x1x128xf32, #tpu.memory_space<vmem>>, vector<1x1x128xf32>
    %108 = vector.shape_cast %107 : vector<1x1x128xf32> to vector<1x128xf32>
    %109 = vector.shape_cast %106 : vector<1x128xf32> to vector<1x1x128xf32>
    tpu.vector_store %arg12[%c0_52, %c0_53, %c0_54], %109 {strides = array<i32>} : memref<1x1x128xf32, #tpu.memory_space<vmem>>, vector<1x1x128xf32>,
    return
  }
  func.func @transform_0(%arg0: i32) -> (i32, i32, i32) {
    %c0_i32 = arith.constant 0 : i32
    %c0_i32_0 = arith.constant 0 : i32
    %c0_i32_1 = arith.constant 0 : i32
    return %arg0, %c0_i32, %c0_i32_0 : i32, i32, i32
  }
  func.func @transform_1(%arg0: i32) -> (i32, i32, i32) {
    %c0_i32 = arith.constant 0 : i32
    %c0_i32_0 = arith.constant 0 : i32
    %c0_i32_1 = arith.constant 0 : i32
    return %arg0, %c0_i32, %c0_i32_0 : i32, i32, i32
  }
  func.func @transform_2(%arg0: i32) -> (i32, i32) {
    %c0_i32 = arith.constant 0 : i32
    %c0_i32_0 = arith.constant 0 : i32
    %c0_i32_1 = arith.constant 0 : i32
    return %c0_i32, %c0_i32_0 : i32, i32
  }
  func.func @transform_3(%arg0: i32) -> (i32, i32) {
    %c0_i32 = arith.constant 0 : i32
    %c0_i32_0 = arith.constant 0 : i32
    %c0_i32_1 = arith.constant 0 : i32
    return %c0_i32, %c0_i32_0 : i32, i32
  }
  func.func @transform_4(%arg0: i32) -> (i32, i32) {
    %c0_i32 = arith.constant 0 : i32
    %c0_i32_0 = arith.constant 0 : i32
    %c0_i32_1 = arith.constant 0 : i32
    return %c0_i32, %c0_i32_0 : i32, i32
  }
  func.func @transform_5(%arg0: i32) -> (i32, i32) {
    %c0_i32 = arith.constant 0 : i32
    %c0_i32_0 = arith.constant 0 : i32
    %c0_i32_1 = arith.constant 0 : i32
    return %c0_i32, %c0_i32_0 : i32, i32
  }
  func.func @transform_6(%arg0: i32) -> (i32, i32) {
    %c0_i32 = arith.constant 0 : i32
    %c0_i32_0 = arith.constant 0 : i32
    %c0_i32_1 = arith.constant 0 : i32
    return %c0_i32, %c0_i32_0 : i32, i32
  }
  func.func @transform_7(%arg0: i32) -> (i32, i32) {
    %c0_i32 = arith.constant 0 : i32
    %c0_i32_0 = arith.constant 0 : i32
    %c0_i32_1 = arith.constant 0 : i32
    return %c0_i32, %c0_i32_0 : i32, i32
  }
  func.func @transform_8(%arg0: i32) -> (i32, i32) {
    %c0_i32 = arith.constant 0 : i32
    %c0_i32_0 = arith.constant 0 : i32
    %c0_i32_1 = arith.constant 0 : i32
    return %c0_i32, %c0_i32_0 : i32, i32
  }
  func.func @transform_9(%arg0: i32) -> (i32, i32) {
    %c0_i32 = arith.constant 0 : i32
    %c0_i32_0 = arith.constant 0 : i32
    %c0_i32_1 = arith.constant 0 : i32
    return %c0_i32, %c0_i32_0 : i32, i32
  }
  func.func @transform_10(%arg0: i32) -> i32 {
    %c0_i32 = arith.constant 0 : i32
    %c0_i32_0 = arith.constant 0 : i32
    return %c0_i32 : i32
  }
  func.func @transform_11(%arg0: i32) -> (i32, i32, i32) {
    %c0_i32 = arith.constant 0 : i32
    %c0_i32_0 = arith.constant 0 : i32
    %c0_i32_1 = arith.constant 0 : i32
    return %arg0, %c0_i32, %c0_i32_0 : i32, i32, i32
  }
}

</mosaic_0001>

<llo_original>
// kernel: tpu_custom_call.1
$region0: #{tpu_custom_call.1}
  #allocation0 [shape = 'u32[]', space=smem, size = 0x4, offset = 0x4, fixed_abs, tag = 'smem constant byte address 0x4 - core index']
  #allocation1 [shape = 'u32[144,128]{1,0:T(1,128)}', space=vmem, size = 0x12000, scoped, tag = 'internal scratch']
  %s0 = inlined_call_operand.vmem [shape: f32[2,8,16], index: 0, kind: input, shape index: {}]
  %s1 = inlined_call_operand.vmem [shape: f32[1,1,128], index: 1, kind: input, shape index: {}]
  %s2 = inlined_call_operand.vmem [shape: f32[128,16], index: 2, kind: input, shape index: {}]
  %s3 = inlined_call_operand.vmem [shape: f32[16,128], index: 3, kind: input, shape index: {}]
  %s4 = inlined_call_operand.vmem [shape: f32[16,16], index: 4, kind: input, shape index: {}]
  %s5 = inlined_call_operand.vmem [shape: f32[16,16], index: 5, kind: input, shape index: {}]
  %s6 = inlined_call_operand.vmem [shape: f32[8,16], index: 6, kind: input, shape index: {}]
  %s7 = inlined_call_operand.vmem [shape: f32[8,8], index: 7, kind: input, shape index: {}]
  %s8 = inlined_call_operand.vmem [shape: f32[48,1], index: 8, kind: input, shape index: {}]
  %s9 = inlined_call_operand.vmem [shape: f32[1,8], index: 9, kind: input, shape index: {}]
  %s10 = inlined_call_operand.vmem [shape: f32[2], index: 10, kind: input, shape index: {}]
  %s11 = inlined_call_operand.hbm [shape: f32[1,1,128], index: 11, kind: output, shape index: {}]
  %s12 = sld [smem:[#allocation0]]
  $region58: #{tpu_custom_call.1} parent=0
    _
  %s14 = ssub.s32 1, %s12
  %s15 = scalar_select 0, %s14, %s12
  $region1: #{tpu_custom_call.1} parent=0
    #allocation2 [shape = 'u8[512]{0}', space=smem, size = 0x200, scoped, tag = 'input window, operand 10, single buffered']
    #allocation3 [shape = 's32[1]{0}', space=sflag, size = 0x4, scoped, tag = 'scoped memory for tpu_custom_call.1']
    #allocation4 [shape = 's32[1]{0}', space=sflag, size = 0x4, scoped, tag = 'scoped memory for tpu_custom_call.1']
    #allocation5 [shape = 'u8[512]{0}', space=vmem, size = 0x400, scoped, tag = 'output window, operand 0, single buffered']
    %16 = vsyncpa [#allocation4], 0
    %17 = vsyncpa [#allocation3], 0
    // Predicated region
    $region2: #{tpu_custom_call.1} parent=1 // pred_check
      _
    $region3: #{tpu_custom_call.1} parent=1 // pred_check_branch
      %19 = sbr.rel (0) target = $region5
    $region4: #{tpu_custom_call.1} parent=1 // pred_region
      _
    $region5: #{tpu_custom_call.1} parent=1 // pred_fallthru
      _
    // Predicated region
    $region6: #{tpu_custom_call.1} parent=1 // pred_check
      _
    $region7: #{tpu_custom_call.1} parent=1 // pred_check_branch
      %21 = sbr.rel (0) target = $region9
    $region8: #{tpu_custom_call.1} parent=1 // pred_region
      _
    $region9: #{tpu_custom_call.1} parent=1 // pred_fallthru
      _
    // Predicated region
    $region10: #{tpu_custom_call.1} parent=1 // pred_check
      _
    $region11: #{tpu_custom_call.1} parent=1 // pred_check_branch
      %23 = sbr.rel (0) target = $region13
    $region12: #{tpu_custom_call.1} parent=1 // pred_region
      _
    $region13: #{tpu_custom_call.1} parent=1 // pred_fallthru
      _
    // Predicated region
    $region14: #{tpu_custom_call.1} parent=1 // pred_check
      _
    $region15: #{tpu_custom_call.1} parent=1 // pred_check_branch
      %25 = sbr.rel (0) target = $region17
    $region16: #{tpu_custom_call.1} parent=1 // pred_region
      _
    $region17: #{tpu_custom_call.1} parent=1 // pred_fallthru
      _
    // Predicated region
    $region18: #{tpu_custom_call.1} parent=1 // pred_check
      _
    $region19: #{tpu_custom_call.1} parent=1 // pred_check_branch
      %27 = sbr.rel (0) target = $region21
    $region20: #{tpu_custom_call.1} parent=1 // pred_region
      _
    $region21: #{tpu_custom_call.1} parent=1 // pred_fallthru
      _
    // Predicated region
    $region22: #{tpu_custom_call.1} parent=1 // pred_check
      _
    $region23: #{tpu_custom_call.1} parent=1 // pred_check_branch
      %29 = sbr.rel (0) target = $region25
    $region24: #{tpu_custom_call.1} parent=1 // pred_region
      _
    $region25: #{tpu_custom_call.1} parent=1 // pred_fallthru
      _
    // Predicated region
    $region26: #{tpu_custom_call.1} parent=1 // pred_check
      _
    $region27: #{tpu_custom_call.1} parent=1 // pred_check_branch
      %31 = sbr.rel (0) target = $region29
    $region28: #{tpu_custom_call.1} parent=1 // pred_region
      _
    $region29: #{tpu_custom_call.1} parent=1 // pred_fallthru
      _
    // Predicated region
    $region30: #{tpu_custom_call.1} parent=1 // pred_check
      _
    $region31: #{tpu_custom_call.1} parent=1 // pred_check_branch
      %33 = sbr.rel (0) target = $region33
    $region32: #{tpu_custom_call.1} parent=1 // pred_region
      _
    $region33: #{tpu_custom_call.1} parent=1 // pred_fallthru
      _
    // Predicated region
    $region34: #{tpu_custom_call.1} parent=1 // pred_check
      _
    $region35: #{tpu_custom_call.1} parent=1 // pred_check_branch
      %35 = sbr.rel (0) target = $region37
    $region36: #{tpu_custom_call.1} parent=1 // pred_region
      _
    $region37: #{tpu_custom_call.1} parent=1 // pred_fallthru
      _
    // Predicated region
    $region38: #{tpu_custom_call.1} parent=1 // pred_check
      _
    $region39: #{tpu_custom_call.1} parent=1 // pred_check_branch
      %37 = sbr.rel (0) target = $region41
    $region40: #{tpu_custom_call.1} parent=1 // pred_region
      _
    $region41: #{tpu_custom_call.1} parent=1 // pred_fallthru
      _
    // Predicated region
    $region42: #{tpu_custom_call.1} parent=1 // pred_check
      _
    $region43: #{tpu_custom_call.1} parent=1 // pred_check_branch
      %39 = sbr.rel (0) target = $region45
    $region44: #{tpu_custom_call.1} parent=1 // pred_region
      %s41 = ssub.s32 16, 16
      %42 = vsyncadd [#allocation4], %s41
      %s44 = sshll.u32 %s10, 4
      %s45 = int_to_ptr.vmem [resolvable:$true] %s44
      %47 = dma.vmem_to_smem %s45, 16, [#allocation2], [#allocation4]
    $region45: #{tpu_custom_call.1} parent=1 // pred_fallthru
      _
    // Predicated region
    $region46: #{tpu_custom_call.1} parent=1 // pred_check
      _
    $region47: #{tpu_custom_call.1} parent=1 // pred_check_branch
      %49 = sbr.rel (0) target = $region49
    $region48: #{tpu_custom_call.1} parent=1 // pred_region
      %50 = dma.done [#allocation4], 16
    $region49: #{tpu_custom_call.1} parent=1 // pred_fallthru
      _
    %51 = sfence
    %s52 = sld [smem:[#allocation2]]
    %s53 = sld [smem:[#allocation2 + $0x1]]
    %v54 = vld [vmem:[%s0] sm:$0xff]
    %v55 = vld [vmem:[%s0 + $0x8] sm:$0xff]
    %v58 = vcombine.high %v54, %v54
    %v60 = vunpack.c.l.s4 1966171168
    %v61 = vunpack.c.0.s8 %v60
    %v62 = vlaneseq
    %v63 = vshrl.u32 %v62, 7
    %v64 = vsub.s32 %v61, %v63
    %v65 = vrot.slane %v54, %v64
    %v67 = vunpack.c.l.s4 1966171168
    %v68 = vunpack.c.0.s8 %v67
    %v69 = vlaneseq
    %v70 = vshrl.u32 %v69, 7
    %v71 = vsub.s32 %v68, %v70
    %v72 = vrot.slane %v58, %v71
    %v73 = vcombine.high %v65, %v65
    %v74 = vcombine.high %v72, %v72
    %v76 = vunpack.c.l.s4 1966171168
    %v77 = vunpack.c.0.s8 %v76
    %v78 = vlaneseq
    %v79 = vshrl.u32 %v78, 7
    %v80 = vsub.s32 %v77, %v79
    %v81 = vrot.slane %v65, %v80
    %v83 = vunpack.c.l.s4 1966171168
    %v84 = vunpack.c.0.s8 %v83
    %v85 = vlaneseq
    %v86 = vshrl.u32 %v85, 7
    %v87 = vsub.s32 %v84, %v86
    %v88 = vrot.slane %v72, %v87
    %v90 = vunpack.c.l.s4 1966171168
    %v91 = vunpack.c.0.s8 %v90
    %v92 = vlaneseq
    %v93 = vshrl.u32 %v92, 7
    %v94 = vsub.s32 %v91, %v93
    %v95 = vrot.slane %v73, %v94
    %v97 = vunpack.c.l.s4 1966171168
    %v98 = vunpack.c.0.s8 %v97
    %v99 = vlaneseq
    %v100 = vshrl.u32 %v99, 7
    %v101 = vsub.s32 %v98, %v100
    %v102 = vrot.slane %v74, %v101
    %v103 = vcombine.high %v81, %v81
    %v104 = vcombine.high %v88, %v88
    %v105 = vcombine.high %v95, %v95
    %v106 = vcombine.high %v102, %v102
    %v107 = vcombine.high %v55, %v55
    %v109 = vunpack.c.l.s4 1966171168
    %v110 = vunpack.c.0.s8 %v109
    %v111 = vlaneseq
    %v112 = vshrl.u32 %v111, 7
    %v113 = vsub.s32 %v110, %v112
    %v114 = vrot.slane %v55, %v113
    %v116 = vunpack.c.l.s4 1966171168
    %v117 = vunpack.c.0.s8 %v116
    %v118 = vlaneseq
    %v119 = vshrl.u32 %v118, 7
    %v120 = vsub.s32 %v117, %v119
    %v121 = vrot.slane %v107, %v120
    %v122 = vcombine.high %v114, %v114
    %v123 = vcombine.high %v121, %v121
    %v125 = vunpack.c.l.s4 1966171168
    %v126 = vunpack.c.0.s8 %v125
    %v127 = vlaneseq
    %v128 = vshrl.u32 %v127, 7
    %v129 = vsub.s32 %v126, %v128
    %v130 = vrot.slane %v114, %v129
    %v132 = vunpack.c.l.s4 1966171168
    %v133 = vunpack.c.0.s8 %v132
    %v134 = vlaneseq
    %v135 = vshrl.u32 %v134, 7
    %v136 = vsub.s32 %v133, %v135
    %v137 = vrot.slane %v121, %v136
    %v139 = vunpack.c.l.s4 1966171168
    %v140 = vunpack.c.0.s8 %v139
    %v141 = vlaneseq
    %v142 = vshrl.u32 %v141, 7
    %v143 = vsub.s32 %v140, %v142
    %v144 = vrot.slane %v122, %v143
    %v146 = vunpack.c.l.s4 1966171168
    %v147 = vunpack.c.0.s8 %v146
    %v148 = vlaneseq
    %v149 = vshrl.u32 %v148, 7
    %v150 = vsub.s32 %v147, %v149
    %v151 = vrot.slane %v123, %v150
    %v152 = vcombine.high %v130, %v130
    %v153 = vcombine.high %v137, %v137
    %v154 = vcombine.high %v144, %v144
    %v155 = vcombine.high %v151, %v151
    %v156 = vlaneseq
    %v157 = vshrl.u32 %v156, 7
    %v158 = vsub.s32 0, %v157
    %v159 = vrot.slane %v81, %v158
    %v160 = vlaneseq
    %v161 = vshrl.u32 %v160, 7
    %v162 = vsub.s32 0, %v161
    %v163 = vrot.slane %v95, %v162
    %v164 = vlaneseq
    %v165 = vshrl.u32 %v164, 7
    %v166 = vsub.s32 0, %v165
    %v167 = vrot.slane %v103, %v166
    %v168 = vlaneseq
    %v169 = vshrl.u32 %v168, 7
    %v170 = vsub.s32 0, %v169
    %v171 = vrot.slane %v105, %v170
    %v172 = vlaneseq
    %v173 = vshrl.u32 %v172, 7
    %v174 = vsub.s32 0, %v173
    %v175 = vrot.slane %v88, %v174
    %v176 = vlaneseq
    %v177 = vshrl.u32 %v176, 7
    %v178 = vsub.s32 0, %v177
    %v179 = vrot.slane %v102, %v178
    %v180 = vlaneseq
    %v181 = vshrl.u32 %v180, 7
    %v182 = vsub.s32 0, %v181
    %v183 = vrot.slane %v104, %v182
    %v184 = vlaneseq
    %v185 = vshrl.u32 %v184, 7
    %v186 = vsub.s32 0, %v185
    %v187 = vrot.slane %v106, %v186
    %v188 = vlaneseq
    %v189 = vshrl.u32 %v188, 7
    %v190 = vsub.s32 0, %v189
    %v191 = vrot.slane %v130, %v190
    %v192 = vlaneseq
    %v193 = vshrl.u32 %v192, 7
    %v194 = vsub.s32 0, %v193
    %v195 = vrot.slane %v144, %v194
    %v196 = vlaneseq
    %v197 = vshrl.u32 %v196, 7
    %v198 = vsub.s32 0, %v197
    %v199 = vrot.slane %v152, %v198
    %v200 = vlaneseq
    %v201 = vshrl.u32 %v200, 7
    %v202 = vsub.s32 0, %v201
    %v203 = vrot.slane %v154, %v202
    %v204 = vlaneseq
    %v205 = vshrl.u32 %v204, 7
    %v206 = vsub.s32 0, %v205
    %v207 = vrot.slane %v137, %v206
    %v208 = vlaneseq
    %v209 = vshrl.u32 %v208, 7
    %v210 = vsub.s32 0, %v209
    %v211 = vrot.slane %v151, %v210
    %v212 = vlaneseq
    %v213 = vshrl.u32 %v212, 7
    %v214 = vsub.s32 0, %v213
    %v215 = vrot.slane %v153, %v214
    %v216 = vlaneseq
    %v217 = vshrl.u32 %v216, 7
    %v218 = vsub.s32 0, %v217
    %v219 = vrot.slane %v155, %v218
    %v236 = vsub.f32 %v159, %v54
    %v237 = vsub.f32 %v163, %v54
    %v238 = vsub.f32 %v167, %v54
    %v239 = vsub.f32 %v171, %v54
    %v240 = vsub.f32 %v175, %v54
    %v241 = vsub.f32 %v179, %v54
    %v242 = vsub.f32 %v183, %v54
    %v243 = vsub.f32 %v187, %v54
    %v244 = vsub.f32 %v191, %v55
    %v245 = vsub.f32 %v195, %v55
    %v246 = vsub.f32 %v199, %v55
    %v247 = vsub.f32 %v203, %v55
    %v248 = vsub.f32 %v207, %v55
    %v249 = vsub.f32 %v211, %v55
    %v250 = vsub.f32 %v215, %v55
    %v251 = vsub.f32 %v219, %v55
    %v252 = vand.u32 2147483647, %v236
    %v253 = vand.u32 2147483647, %v237
    %v254 = vand.u32 2147483647, %v238
    %v255 = vand.u32 2147483647, %v239
    %v256 = vand.u32 2147483647, %v240
    %v257 = vand.u32 2147483647, %v241
    %v258 = vand.u32 2147483647, %v242
    %v259 = vand.u32 2147483647, %v243
    %v260 = vand.u32 2147483647, %v244
    %v261 = vand.u32 2147483647, %v245
    %v262 = vand.u32 2147483647, %v246
    %v263 = vand.u32 2147483647, %v247
    %v264 = vand.u32 2147483647, %v248
    %v265 = vand.u32 2147483647, %v249
    %v266 = vand.u32 2147483647, %v250
    %v267 = vand.u32 2147483647, %v251
    %v268 = vld [vmem:[%s8] sm:$0xff]
    %v269 = vld [vmem:[%s8 + $0x8] sm:$0xff]
    %v270 = vld [vmem:[%s8 + $0x10] sm:$0xff]
    %v271 = vld [vmem:[%s8 + $0x18] sm:$0xff]
    %v272 = vld [vmem:[%s8 + $0x20] sm:$0xff]
    %v273 = vld [vmem:[%s8 + $0x28] sm:$0xff]
    %v274 = vld [vmem:[%s4] sm:$0xff]
    %v275 = vld [vmem:[%s4 + $0x8] sm:$0xff]
    %277 = vset.pattern.permute.xlu0 0
    %278 = vperm.xlu0 %277, %v268
    %v279 = vpop.permute.xlu0 %278
    %282 = vset.pattern.permute.xlu0 0
    %283 = vperm.xlu0 %282, %v269
    %v284 = vpop.permute.xlu0 %283
    %vm286 = vcmask 130048
    %v288 = vsel %vm286, %v274, 0
    %v291 = vsel %vm286, %v275, 0
    %v294 = vsel %vm286, %v252, 0
    %v297 = vsel %vm286, %v253, 0
    %v300 = vsel %vm286, %v254, 0
    %v303 = vsel %vm286, %v255, 0
    %v306 = vsel %vm286, %v256, 0
    %v309 = vsel %vm286, %v257, 0
    %v312 = vsel %vm286, %v258, 0
    %v315 = vsel %vm286, %v259, 0
    %v318 = vsel %vm286, %v260, 0
    %v321 = vsel %vm286, %v261, 0
    %v324 = vsel %vm286, %v262, 0
    %v327 = vsel %vm286, %v263, 0
    %v330 = vsel %vm286, %v264, 0
    %v333 = vsel %vm286, %v265, 0
    %v336 = vsel %vm286, %v266, 0
    %v339 = vsel %vm286, %v267, 0
    %341 = vmatprep.subr.mxu0 0.0
    %342 = vmatpush1.xpose.msra.mxu0 %v294
    %343 = vmatprep.subr.mxu0 0.0
    %344 = vmatpush1.xpose.msra.mxu0 %v297
    %345 = vmatprep.subr.mxu0 0.0
    %346 = vmatpush1.xpose.msra.mxu0 %v300
    %347 = vmatprep.subr.mxu0 0.0
    %348 = vmatpush1.xpose.msra.mxu0 %v303
    %349 = vmatprep.subr.mxu0 0.0
    %350 = vmatpush1.xpose.msra.mxu0 %v306
    %351 = vmatprep.subr.mxu0 0.0
    %352 = vmatpush1.xpose.msra.mxu0 %v309
    %353 = vmatprep.subr.mxu0 0.0
    %354 = vmatpush1.xpose.msra.mxu0 %v312
    %355 = vmatprep.subr.mxu0 0.0
    %356 = vmatpush1.xpose.msra.mxu0 %v315
    %357 = vmatprep.subr.mxu0 0.0
    %358 = vmatpush1.xpose.msra.mxu0 %v318
    %359 = vmatprep.subr.mxu0 0.0
    %360 = vmatpush1.xpose.msra.mxu0 %v321
    %361 = vmatprep.subr.mxu0 0.0
    %362 = vmatpush1.xpose.msra.mxu0 %v324
    %363 = vmatprep.subr.mxu0 0.0
    %364 = vmatpush1.xpose.msra.mxu0 %v327
    %365 = vmatprep.subr.mxu0 0.0
    %366 = vmatpush1.xpose.msra.mxu0 %v330
    %367 = vmatprep.subr.mxu0 0.0
    %368 = vmatpush1.xpose.msra.mxu0 %v333
    %369 = vmatprep.subr.mxu0 0.0
    %370 = vmatpush1.xpose.msra.mxu0 %v336
    %371 = vmatprep.subr.mxu0 0.0
    %372 = vmatpush1.xpose.msra.mxu0 %v339
    %373 = vmatprep.subr.mxu0 0.0
    %374 = vmatpush1.xpose.msra.mxu0 0.0
    %375 = vmatprep.subr.mxu0 0.0
    %376 = vmatpush1.xpose.msra.mxu0 0.0
    %377 = vmatprep.subr.mxu0 0.0
    %378 = vmatpush1.xpose.msra.mxu0 0.0
    %379 = vmatprep.subr.mxu0 0.0
    %380 = vmatpush1.xpose.msra.mxu0 0.0
    %381 = vmatprep.subr.mxu0 0.0
    %382 = vmatpush1.xpose.msra.mxu0 0.0
    %383 = vmatprep.subr.mxu0 0.0
    %384 = vmatpush1.xpose.msra.mxu0 0.0
    %385 = vmatprep.subr.mxu0 0.0
    %386 = vmatpush1.xpose.msra.mxu0 0.0
    %387 = vmatprep.subr.mxu0 0.0
    %388 = vmatpush1.xpose.msra.mxu0 0.0
    %389 = vmatprep.subr.mxu0 0.0
    %390 = vmatpush1.xpose.msra.mxu0 0.0
    %391 = vmatprep.subr.mxu0 0.0
    %392 = vmatpush1.xpose.msra.mxu0 0.0
    %393 = vmatprep.subr.mxu0 0.0
    %394 = vmatpush1.xpose.msra.mxu0 0.0
    %395 = vmatprep.subr.mxu0 0.0
    %396 = vmatpush1.xpose.msra.mxu0 0.0
    %397 = vmatprep.subr.mxu0 0.0
    %398 = vmatpush1.xpose.msra.mxu0 0.0
    %399 = vmatprep.subr.mxu0 0.0
    %400 = vmatpush1.xpose.msra.mxu0 0.0
    %401 = vmatprep.subr.mxu0 0.0
    %402 = vmatpush1.xpose.msra.mxu0 0.0
    %403 = vmatprep.subr.mxu0 0.0
    %404 = vmatpush1.xpose.msra.mxu0 0.0
    %405 = vmatprep.mubr.f32.mxu0 0.0
    %406 = vmatmul.mubr.f32.gmra.mrb[0].mxu0 %v288
    %v407 = vpop.f32.mrb[0].mxu0
    %v408 = vadd.f32 %v279, %v407
    %v409 = vpop.f32.mrb[0].mxu0
    %410 = vmatprep.mubr.f32.mxu0 0.0
    %411 = vmatmul.mubr.f32.gmra.mrb[0].mxu0 %v291
    %v412 = vpop.f32.mrb[0].mxu0
    %v413 = vadd.f32 %v284, %v412
    %v414 = vpop.f32.mrb[0].mxu0
    %415 = vdwg.mxu0
    %vm416 = vcmp.gt.f32.partialorder %v408, 0.0
    %vm417 = vcmp.gt.f32.partialorder %v413, 0.0
    %v418 = vmul.f32 %v408, 0.01
    %v419 = vmul.f32 %v413, 0.01
    %v420 = vsel %vm416, %v408, %v418
    %v421 = vsel %vm417, %v413, %v419
    %v422 = vld [vmem:[%s5] sm:$0xff]
    %v423 = vld [vmem:[%s5 + $0x8] sm:$0xff]
    %425 = vset.pattern.permute.xlu0 0
    %426 = vperm.xlu0 %425, %v270
    %v427 = vpop.permute.xlu0 %426
    %430 = vset.pattern.permute.xlu0 0
    %431 = vperm.xlu0 %430, %v271
    %v432 = vpop.permute.xlu0 %431
    %v435 = vsel %vm286, %v422, 0
    %v438 = vsel %vm286, %v423, 0
    %440 = vmatprep.subr.mxu0 0.0
    %441 = vmatpush1.msra.mxu0 %v420
    %442 = vmatprep.subr.mxu0 0.0
    %443 = vmatpush1.msra.mxu0 %v421
    %444 = vmatprep.subr.mxu0 0.0
    %445 = vmatpush1.msra.mxu0 0.0
    %446 = vmatprep.subr.mxu0 0.0
    %447 = vmatpush1.msra.mxu0 0.0
    %448 = vmatprep.subr.mxu0 0.0
    %449 = vmatpush1.msra.mxu0 0.0
    %450 = vmatprep.subr.mxu0 0.0
    %451 = vmatpush1.msra.mxu0 0.0
    %452 = vmatprep.subr.mxu0 0.0
    %453 = vmatpush1.msra.mxu0 0.0
    %454 = vmatprep.subr.mxu0 0.0
    %455 = vmatpush1.msra.mxu0 0.0
    %456 = vmatprep.subr.mxu0 0.0
    %457 = vmatpush1.msra.mxu0 0.0
    %458 = vmatprep.subr.mxu0 0.0
    %459 = vmatpush1.msra.mxu0 0.0
    %460 = vmatprep.subr.mxu0 0.0
    %461 = vmatpush1.msra.mxu0 0.0
    %462 = vmatprep.subr.mxu0 0.0
    %463 = vmatpush1.msra.mxu0 0.0
    %464 = vmatprep.subr.mxu0 0.0
    %465 = vmatpush1.msra.mxu0 0.0
    %466 = vmatprep.subr.mxu0 0.0
    %467 = vmatpush1.msra.mxu0 0.0
    %468 = vmatprep.subr.mxu0 0.0
    %469 = vmatpush1.msra.mxu0 0.0
    %470 = vmatprep.subr.mxu0 0.0
    %471 = vmatpush1.msra.mxu0 0.0
    %472 = vmatprep.subr.mxu0 0.0
    %473 = vmatpush1.msra.mxu0 0.0
    %474 = vmatprep.subr.mxu0 0.0
    %475 = vmatpush1.msra.mxu0 0.0
    %476 = vmatprep.subr.mxu0 0.0
    %477 = vmatpush1.msra.mxu0 0.0
    %478 = vmatprep.subr.mxu0 0.0
    %479 = vmatpush1.msra.mxu0 0.0
    %480 = vmatprep.subr.mxu0 0.0
    %481 = vmatpush1.msra.mxu0 0.0
    %482 = vmatprep.subr.mxu0 0.0
    %483 = vmatpush1.msra.mxu0 0.0
    %484 = vmatprep.subr.mxu0 0.0
    %485 = vmatpush1.msra.mxu0 0.0
    %486 = vmatprep.subr.mxu0 0.0
    %487 = vmatpush1.msra.mxu0 0.0
    %488 = vmatprep.subr.mxu0 0.0
    %489 = vmatpush1.msra.mxu0 0.0
    %490 = vmatprep.subr.mxu0 0.0
    %491 = vmatpush1.msra.mxu0 0.0
    %492 = vmatprep.subr.mxu0 0.0
    %493 = vmatpush1.msra.mxu0 0.0
    %494 = vmatprep.subr.mxu0 0.0
    %495 = vmatpush1.msra.mxu0 0.0
    %496 = vmatprep.subr.mxu0 0.0
    %497 = vmatpush1.msra.mxu0 0.0
    %498 = vmatprep.subr.mxu0 0.0
    %499 = vmatpush1.msra.mxu0 0.0
    %500 = vmatprep.subr.mxu0 0.0
    %501 = vmatpush1.msra.mxu0 0.0
    %502 = vmatprep.subr.mxu0 0.0
    %503 = vmatpush1.msra.mxu0 0.0
    %504 = vmatprep.mubr.f32.mxu0 0.0
    %505 = vmatmul.mubr.f32.gmra.mrb[0].mxu0 %v435
    %v506 = vpop.f32.mrb[0].mxu0
    %v507 = vadd.f32 %v427, %v506
    %v508 = vpop.f32.mrb[0].mxu0
    %509 = vmatprep.mubr.f32.mxu0 0.0
    %510 = vmatmul.mubr.f32.gmra.mrb[0].mxu0 %v438
    %v511 = vpop.f32.mrb[0].mxu0
    %v512 = vadd.f32 %v432, %v511
    %v513 = vpop.f32.mrb[0].mxu0
    %514 = vdwg.mxu0
    %vm515 = vcmp.gt.f32.partialorder %v507, 0.0
    %vm516 = vcmp.gt.f32.partialorder %v512, 0.0
    %v517 = vmul.f32 %v507, 0.01
    %v518 = vmul.f32 %v512, 0.01
    %v519 = vsel %vm515, %v507, %v517
    %v520 = vsel %vm516, %v512, %v518
    %v521 = vld [vmem:[%s6] sm:$0xff]
    %523 = vset.pattern.permute.xlu0 0
    %524 = vperm.xlu0 %523, %v272
    %v525 = vpop.permute.xlu0 %524
    %v528 = vsel %vm286, %v521, 0
    %530 = vmatprep.subr.mxu0 0.0
    %531 = vmatpush1.msra.mxu0 %v519
    %532 = vmatprep.subr.mxu0 0.0
    %533 = vmatpush1.msra.mxu0 %v520
    %534 = vmatprep.subr.mxu0 0.0
    %535 = vmatpush1.msra.mxu0 0.0
    %536 = vmatprep.subr.mxu0 0.0
    %537 = vmatpush1.msra.mxu0 0.0
    %538 = vmatprep.subr.mxu0 0.0
    %539 = vmatpush1.msra.mxu0 0.0
    %540 = vmatprep.subr.mxu0 0.0
    %541 = vmatpush1.msra.mxu0 0.0
    %542 = vmatprep.subr.mxu0 0.0
    %543 = vmatpush1.msra.mxu0 0.0
    %544 = vmatprep.subr.mxu0 0.0
    %545 = vmatpush1.msra.mxu0 0.0
    %546 = vmatprep.subr.mxu0 0.0
    %547 = vmatpush1.msra.mxu0 0.0
    %548 = vmatprep.subr.mxu0 0.0
    %549 = vmatpush1.msra.mxu0 0.0
    %550 = vmatprep.subr.mxu0 0.0
    %551 = vmatpush1.msra.mxu0 0.0
    %552 = vmatprep.subr.mxu0 0.0
    %553 = vmatpush1.msra.mxu0 0.0
    %554 = vmatprep.subr.mxu0 0.0
    %555 = vmatpush1.msra.mxu0 0.0
    %556 = vmatprep.subr.mxu0 0.0
    %557 = vmatpush1.msra.mxu0 0.0
    %558 = vmatprep.subr.mxu0 0.0
    %559 = vmatpush1.msra.mxu0 0.0
    %560 = vmatprep.subr.mxu0 0.0
    %561 = vmatpush1.msra.mxu0 0.0
    %562 = vmatprep.subr.mxu0 0.0
    %563 = vmatpush1.msra.mxu0 0.0
    %564 = vmatprep.subr.mxu0 0.0
    %565 = vmatpush1.msra.mxu0 0.0
    %566 = vmatprep.subr.mxu0 0.0
    %567 = vmatpush1.msra.mxu0 0.0
    %568 = vmatprep.subr.mxu0 0.0
    %569 = vmatpush1.msra.mxu0 0.0
    %570 = vmatprep.subr.mxu0 0.0
    %571 = vmatpush1.msra.mxu0 0.0
    %572 = vmatprep.subr.mxu0 0.0
    %573 = vmatpush1.msra.mxu0 0.0
    %574 = vmatprep.subr.mxu0 0.0
    %575 = vmatpush1.msra.mxu0 0.0
    %576 = vmatprep.subr.mxu0 0.0
    %577 = vmatpush1.msra.mxu0 0.0
    %578 = vmatprep.subr.mxu0 0.0
    %579 = vmatpush1.msra.mxu0 0.0
    %580 = vmatprep.subr.mxu0 0.0
    %581 = vmatpush1.msra.mxu0 0.0
    %582 = vmatprep.subr.mxu0 0.0
    %583 = vmatpush1.msra.mxu0 0.0
    %584 = vmatprep.subr.mxu0 0.0
    %585 = vmatpush1.msra.mxu0 0.0
    %586 = vmatprep.subr.mxu0 0.0
    %587 = vmatpush1.msra.mxu0 0.0
    %588 = vmatprep.subr.mxu0 0.0
    %589 = vmatpush1.msra.mxu0 0.0
    %590 = vmatprep.subr.mxu0 0.0
    %591 = vmatpush1.msra.mxu0 0.0
    %592 = vmatprep.subr.mxu0 0.0
    %593 = vmatpush1.msra.mxu0 0.0
    %594 = vmatprep.mubr.f32.mxu0 0.0
    %595 = vmatmul.mubr.f32.gmra.mrb[0].mxu0 %v528
    %v596 = vpop.f32.mrb[0].mxu0
    %v597 = vadd.f32 %v525, %v596
    %v598 = vpop.f32.mrb[0].mxu0
    %599 = vdwg.mxu0
    %vm600 = vcmp.gt.f32.partialorder %v597, 0.0
    %v601 = vmul.f32 %v597, 0.01
    %v602 = vsel %vm600, %v597, %v601
    %v603 = vld [vmem:[%s7] sm:$0xff]
    %605 = vset.pattern.permute.xlu0 0
    %606 = vperm.xlu0 %605, %v273
    %v607 = vpop.permute.xlu0 %606
    %vm609 = vcmask 64512
    %v611 = vsel %vm609, %v603, 0
    %613 = vmatprep.subr.mxu0 0.0
    %614 = vmatpush1.msra.mxu0 %v602
    %615 = vmatprep.subr.mxu0 0.0
    %616 = vmatpush1.msra.mxu0 0.0
    %617 = vmatprep.subr.mxu0 0.0
    %618 = vmatpush1.msra.mxu0 0.0
    %619 = vmatprep.subr.mxu0 0.0
    %620 = vmatpush1.msra.mxu0 0.0
    %621 = vmatprep.subr.mxu0 0.0
    %622 = vmatpush1.msra.mxu0 0.0
    %623 = vmatprep.subr.mxu0 0.0
    %624 = vmatpush1.msra.mxu0 0.0
    %625 = vmatprep.subr.mxu0 0.0
    %626 = vmatpush1.msra.mxu0 0.0
    %627 = vmatprep.subr.mxu0 0.0
    %628 = vmatpush1.msra.mxu0 0.0
    %629 = vmatprep.subr.mxu0 0.0
    %630 = vmatpush1.msra.mxu0 0.0
    %631 = vmatprep.subr.mxu0 0.0
    %632 = vmatpush1.msra.mxu0 0.0
    %633 = vmatprep.subr.mxu0 0.0
    %634 = vmatpush1.msra.mxu0 0.0
    %635 = vmatprep.subr.mxu0 0.0
    %636 = vmatpush1.msra.mxu0 0.0
    %637 = vmatprep.subr.mxu0 0.0
    %638 = vmatpush1.msra.mxu0 0.0
    %639 = vmatprep.subr.mxu0 0.0
    %640 = vmatpush1.msra.mxu0 0.0
    %641 = vmatprep.subr.mxu0 0.0
    %642 = vmatpush1.msra.mxu0 0.0
    %643 = vmatprep.subr.mxu0 0.0
    %644 = vmatpush1.msra.mxu0 0.0
    %645 = vmatprep.subr.mxu0 0.0
    %646 = vmatpush1.msra.mxu0 0.0
    %647 = vmatprep.subr.mxu0 0.0
    %648 = vmatpush1.msra.mxu0 0.0
    %649 = vmatprep.subr.mxu0 0.0
    %650 = vmatpush1.msra.mxu0 0.0
    %651 = vmatprep.subr.mxu0 0.0
    %652 = vmatpush1.msra.mxu0 0.0
    %653 = vmatprep.subr.mxu0 0.0
    %654 = vmatpush1.msra.mxu0 0.0
    %655 = vmatprep.subr.mxu0 0.0
    %656 = vmatpush1.msra.mxu0 0.0
    %657 = vmatprep.subr.mxu0 0.0
    %658 = vmatpush1.msra.mxu0 0.0
    %659 = vmatprep.subr.mxu0 0.0
    %660 = vmatpush1.msra.mxu0 0.0
    %661 = vmatprep.subr.mxu0 0.0
    %662 = vmatpush1.msra.mxu0 0.0
    %663 = vmatprep.subr.mxu0 0.0
    %664 = vmatpush1.msra.mxu0 0.0
    %665 = vmatprep.subr.mxu0 0.0
    %666 = vmatpush1.msra.mxu0 0.0
    %667 = vmatprep.subr.mxu0 0.0
    %668 = vmatpush1.msra.mxu0 0.0
    %669 = vmatprep.subr.mxu0 0.0
    %670 = vmatpush1.msra.mxu0 0.0
    %671 = vmatprep.subr.mxu0 0.0
    %672 = vmatpush1.msra.mxu0 0.0
    %673 = vmatprep.subr.mxu0 0.0
    %674 = vmatpush1.msra.mxu0 0.0
    %675 = vmatprep.subr.mxu0 0.0
    %676 = vmatpush1.msra.mxu0 0.0
    %677 = vmatprep.mubr.f32.mxu0 0.0
    %678 = vmatmul.mubr.f32.gmra.mrb[0].mxu0 %v611
    %v679 = vpop.f32.mrb[0].mxu0
    %v680 = vadd.f32 %v607, %v679
    %v681 = vpop.f32.mrb[0].mxu0
    %682 = vdwg.mxu0
    %vm683 = vcmp.gt.f32.partialorder %v680, 0.0
    %v684 = vmul.f32 %v680, 0.01
    %v685 = vsel %vm683, %v680, %v684
    %vm686 = vcmask 523264
    %v688 = vsel %vm686, %v685, 0
    %690 = vmatprep.subr.mxu0 0.0
    %691 = vmatpush1.xpose.msra.mxu0 %v688
    %692 = vmatprep.subr.mxu0 0.0
    %693 = vmatpush1.xpose.msra.mxu0 0.0
    %694 = vmatprep.subr.mxu0 0.0
    %695 = vmatpush1.xpose.msra.mxu0 0.0
    %696 = vmatprep.subr.mxu0 0.0
    %697 = vmatpush1.xpose.msra.mxu0 0.0
    %698 = vmatprep.subr.mxu0 0.0
    %699 = vmatpush1.xpose.msra.mxu0 0.0
    %700 = vmatprep.subr.mxu0 0.0
    %701 = vmatpush1.xpose.msra.mxu0 0.0
    %702 = vmatprep.subr.mxu0 0.0
    %703 = vmatpush1.xpose.msra.mxu0 0.0
    %704 = vmatprep.subr.mxu0 0.0
    %705 = vmatpush1.xpose.msra.mxu0 0.0
    %706 = vmatprep.subr.mxu0 0.0
    %707 = vmatpush1.xpose.msra.mxu0 0.0
    %708 = vmatprep.subr.mxu0 0.0
    %709 = vmatpush1.xpose.msra.mxu0 0.0
    %710 = vmatprep.subr.mxu0 0.0
    %711 = vmatpush1.xpose.msra.mxu0 0.0
    %712 = vmatprep.subr.mxu0 0.0
    %713 = vmatpush1.xpose.msra.mxu0 0.0
    %714 = vmatprep.subr.mxu0 0.0
    %715 = vmatpush1.xpose.msra.mxu0 0.0
    %716 = vmatprep.subr.mxu0 0.0
    %717 = vmatpush1.xpose.msra.mxu0 0.0
    %718 = vmatprep.subr.mxu0 0.0
    %719 = vmatpush1.xpose.msra.mxu0 0.0
    %720 = vmatprep.subr.mxu0 0.0
    %721 = vmatpush1.xpose.msra.mxu0 0.0
    %722 = vmatprep.subr.mxu0 0.0
    %723 = vmatpush1.xpose.msra.mxu0 0.0
    %724 = vmatprep.subr.mxu0 0.0
    %725 = vmatpush1.xpose.msra.mxu0 0.0
    %726 = vmatprep.subr.mxu0 0.0
    %727 = vmatpush1.xpose.msra.mxu0 0.0
    %728 = vmatprep.subr.mxu0 0.0
    %729 = vmatpush1.xpose.msra.mxu0 0.0
    %730 = vmatprep.subr.mxu0 0.0
    %731 = vmatpush1.xpose.msra.mxu0 0.0
    %732 = vmatprep.subr.mxu0 0.0
    %733 = vmatpush1.xpose.msra.mxu0 0.0
    %734 = vmatprep.subr.mxu0 0.0
    %735 = vmatpush1.xpose.msra.mxu0 0.0
    %736 = vmatprep.subr.mxu0 0.0
    %737 = vmatpush1.xpose.msra.mxu0 0.0
    %738 = vmatprep.subr.mxu0 0.0
    %739 = vmatpush1.xpose.msra.mxu0 0.0
    %740 = vmatprep.subr.mxu0 0.0
    %741 = vmatpush1.xpose.msra.mxu0 0.0
    %742 = vmatprep.subr.mxu0 0.0
    %743 = vmatpush1.xpose.msra.mxu0 0.0
    %744 = vmatprep.subr.mxu0 0.0
    %745 = vmatpush1.xpose.msra.mxu0 0.0
    %746 = vmatprep.subr.mxu0 0.0
    %747 = vmatpush1.xpose.msra.mxu0 0.0
    %748 = vmatprep.subr.mxu0 0.0
    %749 = vmatpush1.xpose.msra.mxu0 0.0
    %750 = vmatprep.subr.mxu0 0.0
    %751 = vmatpush1.xpose.msra.mxu0 0.0
    %752 = vmatprep.subr.mxu0 0.0
    %753 = vmatpush1.xpose.msra.mxu0 0.0
    %754 = vmatprep.mubr.f32.mxu0 0.0
    %755 = vmatmul.mubr.f32.gmra.mrb[0].mxu0 %v688
    %v756 = vpop.f32.mrb[0].mxu0
    %v757 = vadd.f32 0.0, %v756
    %v758 = vpop.f32.mrb[0].mxu0
    %759 = vdwg.mxu0
    %v760 = vsel %vm609, %v757, -inf
    %761 = vmax.xlane.f32.xlu0 %v760
    %v762 = vpop.xlane.xlu0 %761
    %v763 = vsub.f32 %v762, %v757
    %v764 = vsel %vm609, %v763, -inf
    %765 = vmax.xlane.f32.xlu0 %v764
    %v766 = vpop.xlane.xlu0 %765
    %v767 = vsub.f32 %v763, %v766
    %v768 = vmul.f32 %v767, 1.442695
    %v769 = vpow.pop %v768
    %v770 = vsel %vm609, %v769, 0.0
    %771 = vadd.xlane.f32.xlu0 %v770
    %v772 = vpop.xlane.xlu0 %771
    %v773 = vrcp.pop %v772
    %v774 = vmul.f32 %v769, %v773
    %v776 = vsel %vm609, %v774, 0
    %778 = vmatprep.subr.mxu0 0.0
    %779 = vmatpush1.msra.mxu0 %v685
    %780 = vmatprep.subr.mxu0 0.0
    %781 = vmatpush1.msra.mxu0 0.0
    %782 = vmatprep.subr.mxu0 0.0
    %783 = vmatpush1.msra.mxu0 0.0
    %784 = vmatprep.subr.mxu0 0.0
    %785 = vmatpush1.msra.mxu0 0.0
    %786 = vmatprep.subr.mxu0 0.0
    %787 = vmatpush1.msra.mxu0 0.0
    %788 = vmatprep.subr.mxu0 0.0
    %789 = vmatpush1.msra.mxu0 0.0
    %790 = vmatprep.subr.mxu0 0.0
    %791 = vmatpush1.msra.mxu0 0.0
    %792 = vmatprep.subr.mxu0 0.0
    %793 = vmatpush1.msra.mxu0 0.0
    %794 = vmatprep.subr.mxu0 0.0
    %795 = vmatpush1.msra.mxu0 0.0
    %796 = vmatprep.subr.mxu0 0.0
    %797 = vmatpush1.msra.mxu0 0.0
    %798 = vmatprep.subr.mxu0 0.0
    %799 = vmatpush1.msra.mxu0 0.0
    %800 = vmatprep.subr.mxu0 0.0
    %801 = vmatpush1.msra.mxu0 0.0
    %802 = vmatprep.subr.mxu0 0.0
    %803 = vmatpush1.msra.mxu0 0.0
    %804 = vmatprep.subr.mxu0 0.0
    %805 = vmatpush1.msra.mxu0 0.0
    %806 = vmatprep.subr.mxu0 0.0
    %807 = vmatpush1.msra.mxu0 0.0
    %808 = vmatprep.subr.mxu0 0.0
    %809 = vmatpush1.msra.mxu0 0.0
    %810 = vmatprep.subr.mxu0 0.0
    %811 = vmatpush1.msra.mxu0 0.0
    %812 = vmatprep.subr.mxu0 0.0
    %813 = vmatpush1.msra.mxu0 0.0
    %814 = vmatprep.subr.mxu0 0.0
    %815 = vmatpush1.msra.mxu0 0.0
    %816 = vmatprep.subr.mxu0 0.0
    %817 = vmatpush1.msra.mxu0 0.0
    %818 = vmatprep.subr.mxu0 0.0
    %819 = vmatpush1.msra.mxu0 0.0
    %820 = vmatprep.subr.mxu0 0.0
    %821 = vmatpush1.msra.mxu0 0.0
    %822 = vmatprep.subr.mxu0 0.0
    %823 = vmatpush1.msra.mxu0 0.0
    %824 = vmatprep.subr.mxu0 0.0
    %825 = vmatpush1.msra.mxu0 0.0
    %826 = vmatprep.subr.mxu0 0.0
    %827 = vmatpush1.msra.mxu0 0.0
    %828 = vmatprep.subr.mxu0 0.0
    %829 = vmatpush1.msra.mxu0 0.0
    %830 = vmatprep.subr.mxu0 0.0
    %831 = vmatpush1.msra.mxu0 0.0
    %832 = vmatprep.subr.mxu0 0.0
    %833 = vmatpush1.msra.mxu0 0.0
    %834 = vmatprep.subr.mxu0 0.0
    %835 = vmatpush1.msra.mxu0 0.0
    %836 = vmatprep.subr.mxu0 0.0
    %837 = vmatpush1.msra.mxu0 0.0
    %838 = vmatprep.subr.mxu0 0.0
    %839 = vmatpush1.msra.mxu0 0.0
    %840 = vmatprep.subr.mxu0 0.0
    %841 = vmatpush1.msra.mxu0 0.0
    %842 = vmatprep.mubr.f32.mxu0 0.0
    %843 = vmatmul.mubr.f32.gmra.mrb[0].mxu0 %v776
    %v844 = vpop.f32.mrb[0].mxu0
    %v845 = vadd.f32 0.0, %v844
    %v846 = vpop.f32.mrb[0].mxu0
    %847 = vdwg.mxu0
    %848 = vrot.lane.b32.xlu0 %v685, 64
    %v849 = vpop.permute.xlu0 %848
    %v850 = vsel %vm686, %v849, 0
    %852 = vmatprep.subr.mxu0 0.0
    %853 = vmatpush1.xpose.msra.mxu0 %v850
    %854 = vmatprep.subr.mxu0 0.0
    %855 = vmatpush1.xpose.msra.mxu0 0.0
    %856 = vmatprep.subr.mxu0 0.0
    %857 = vmatpush1.xpose.msra.mxu0 0.0
    %858 = vmatprep.subr.mxu0 0.0
    %859 = vmatpush1.xpose.msra.mxu0 0.0
    %860 = vmatprep.subr.mxu0 0.0
    %861 = vmatpush1.xpose.msra.mxu0 0.0
    %862 = vmatprep.subr.mxu0 0.0
    %863 = vmatpush1.xpose.msra.mxu0 0.0
    %864 = vmatprep.subr.mxu0 0.0
    %865 = vmatpush1.xpose.msra.mxu0 0.0
    %866 = vmatprep.subr.mxu0 0.0
    %867 = vmatpush1.xpose.msra.mxu0 0.0
    %868 = vmatprep.subr.mxu0 0.0
    %869 = vmatpush1.xpose.msra.mxu0 0.0
    %870 = vmatprep.subr.mxu0 0.0
    %871 = vmatpush1.xpose.msra.mxu0 0.0
    %872 = vmatprep.subr.mxu0 0.0
    %873 = vmatpush1.xpose.msra.mxu0 0.0
    %874 = vmatprep.subr.mxu0 0.0
    %875 = vmatpush1.xpose.msra.mxu0 0.0
    %876 = vmatprep.subr.mxu0 0.0
    %877 = vmatpush1.xpose.msra.mxu0 0.0
    %878 = vmatprep.subr.mxu0 0.0
    %879 = vmatpush1.xpose.msra.mxu0 0.0
    %880 = vmatprep.subr.mxu0 0.0
    %881 = vmatpush1.xpose.msra.mxu0 0.0
    %882 = vmatprep.subr.mxu0 0.0
    %883 = vmatpush1.xpose.msra.mxu0 0.0
    %884 = vmatprep.subr.mxu0 0.0
    %885 = vmatpush1.xpose.msra.mxu0 0.0
    %886 = vmatprep.subr.mxu0 0.0
    %887 = vmatpush1.xpose.msra.mxu0 0.0
    %888 = vmatprep.subr.mxu0 0.0
    %889 = vmatpush1.xpose.msra.mxu0 0.0
    %890 = vmatprep.subr.mxu0 0.0
    %891 = vmatpush1.xpose.msra.mxu0 0.0
    %892 = vmatprep.subr.mxu0 0.0
    %893 = vmatpush1.xpose.msra.mxu0 0.0
    %894 = vmatprep.subr.mxu0 0.0
    %895 = vmatpush1.xpose.msra.mxu0 0.0
    %896 = vmatprep.subr.mxu0 0.0
    %897 = vmatpush1.xpose.msra.mxu0 0.0
    %898 = vmatprep.subr.mxu0 0.0
    %899 = vmatpush1.xpose.msra.mxu0 0.0
    %900 = vmatprep.subr.mxu0 0.0
    %901 = vmatpush1.xpose.msra.mxu0 0.0
    %902 = vmatprep.subr.mxu0 0.0
    %903 = vmatpush1.xpose.msra.mxu0 0.0
    %904 = vmatprep.subr.mxu0 0.0
    %905 = vmatpush1.xpose.msra.mxu0 0.0
    %906 = vmatprep.subr.mxu0 0.0
    %907 = vmatpush1.xpose.msra.mxu0 0.0
    %908 = vmatprep.subr.mxu0 0.0
    %909 = vmatpush1.xpose.msra.mxu0 0.0
    %910 = vmatprep.subr.mxu0 0.0
    %911 = vmatpush1.xpose.msra.mxu0 0.0
    %912 = vmatprep.subr.mxu0 0.0
    %913 = vmatpush1.xpose.msra.mxu0 0.0
    %914 = vmatprep.subr.mxu0 0.0
    %915 = vmatpush1.xpose.msra.mxu0 0.0
    %916 = vmatprep.mubr.f32.mxu0 0.0
    %917 = vmatmul.mubr.f32.gmra.mrb[0].mxu0 %v850
    %v918 = vpop.f32.mrb[0].mxu0
    %v919 = vadd.f32 0.0, %v918
    %v920 = vpop.f32.mrb[0].mxu0
    %921 = vdwg.mxu0
    %v922 = vsel %vm609, %v919, -inf
    %923 = vmax.xlane.f32.xlu0 %v922
    %v924 = vpop.xlane.xlu0 %923
    %v925 = vsub.f32 %v924, %v919
    %v926 = vsel %vm609, %v925, -inf
    %927 = vmax.xlane.f32.xlu0 %v926
    %v928 = vpop.xlane.xlu0 %927
    %v929 = vsub.f32 %v925, %v928
    %v930 = vmul.f32 %v929, 1.442695
    %v931 = vpow.pop %v930
    %v932 = vsel %vm609, %v931, 0.0
    %933 = vadd.xlane.f32.xlu0 %v932
    %v934 = vpop.xlane.xlu0 %933
    %v935 = vrcp.pop %v934
    %v936 = vmul.f32 %v931, %v935
    %v939 = vsel %vm609, %v936, 0
    %941 = vmatprep.subr.mxu0 0.0
    %942 = vmatpush1.msra.mxu0 %v849
    %943 = vmatprep.subr.mxu0 0.0
    %944 = vmatpush1.msra.mxu0 0.0
    %945 = vmatprep.subr.mxu0 0.0
    %946 = vmatpush1.msra.mxu0 0.0
    %947 = vmatprep.subr.mxu0 0.0
    %948 = vmatpush1.msra.mxu0 0.0
    %949 = vmatprep.subr.mxu0 0.0
    %950 = vmatpush1.msra.mxu0 0.0
    %951 = vmatprep.subr.mxu0 0.0
    %952 = vmatpush1.msra.mxu0 0.0
    %953 = vmatprep.subr.mxu0 0.0
    %954 = vmatpush1.msra.mxu0 0.0
    %955 = vmatprep.subr.mxu0 0.0
    %956 = vmatpush1.msra.mxu0 0.0
    %957 = vmatprep.subr.mxu0 0.0
    %958 = vmatpush1.msra.mxu0 0.0
    %959 = vmatprep.subr.mxu0 0.0
    %960 = vmatpush1.msra.mxu0 0.0
    %961 = vmatprep.subr.mxu0 0.0
    %962 = vmatpush1.msra.mxu0 0.0
    %963 = vmatprep.subr.mxu0 0.0
    %964 = vmatpush1.msra.mxu0 0.0
    %965 = vmatprep.subr.mxu0 0.0
    %966 = vmatpush1.msra.mxu0 0.0
    %967 = vmatprep.subr.mxu0 0.0
    %968 = vmatpush1.msra.mxu0 0.0
    %969 = vmatprep.subr.mxu0 0.0
    %970 = vmatpush1.msra.mxu0 0.0
    %971 = vmatprep.subr.mxu0 0.0
    %972 = vmatpush1.msra.mxu0 0.0
    %973 = vmatprep.subr.mxu0 0.0
    %974 = vmatpush1.msra.mxu0 0.0
    %975 = vmatprep.subr.mxu0 0.0
    %976 = vmatpush1.msra.mxu0 0.0
    %977 = vmatprep.subr.mxu0 0.0
    %978 = vmatpush1.msra.mxu0 0.0
    %979 = vmatprep.subr.mxu0 0.0
    %980 = vmatpush1.msra.mxu0 0.0
    %981 = vmatprep.subr.mxu0 0.0
    %982 = vmatpush1.msra.mxu0 0.0
    %983 = vmatprep.subr.mxu0 0.0
    %984 = vmatpush1.msra.mxu0 0.0
    %985 = vmatprep.subr.mxu0 0.0
    %986 = vmatpush1.msra.mxu0 0.0
    %987 = vmatprep.subr.mxu0 0.0
    %988 = vmatpush1.msra.mxu0 0.0
    %989 = vmatprep.subr.mxu0 0.0
    %990 = vmatpush1.msra.mxu0 0.0
    %991 = vmatprep.subr.mxu0 0.0
    %992 = vmatpush1.msra.mxu0 0.0
    %993 = vmatprep.subr.mxu0 0.0
    %994 = vmatpush1.msra.mxu0 0.0
    %995 = vmatprep.subr.mxu0 0.0
    %996 = vmatpush1.msra.mxu0 0.0
    %997 = vmatprep.subr.mxu0 0.0
    %998 = vmatpush1.msra.mxu0 0.0
    %999 = vmatprep.subr.mxu0 0.0
    %1000 = vmatpush1.msra.mxu0 0.0
    %1001 = vmatprep.subr.mxu0 0.0
    %1002 = vmatpush1.msra.mxu0 0.0
    %1003 = vmatprep.subr.mxu0 0.0
    %1004 = vmatpush1.msra.mxu0 0.0
    %1005 = vmatprep.mubr.f32.mxu0 0.0
    %1006 = vmatmul.mubr.f32.gmra.mrb[0].mxu0 %v939
    %v1007 = vpop.f32.mrb[0].mxu0
    %v1008 = vadd.f32 0.0, %v1007
    %v1009 = vpop.f32.mrb[0].mxu0
    %1010 = vdwg.mxu0
    %1012 = vrot.lane.b32.xlu0 %v1008, 64
    %v1013 = vpop.permute.xlu0 %1012
    %v1015 = vsel %vm686, %v845, %v1013
    %v1016 = vstv %s52
    %v1017 = vmul.f32 %v1016, %v1015
    %v1018 = vadd.f32 %v1017, %v685
    %v1019 = vld [vmem:[%s9] sm:$0x1]
    %v1020 = vstv %s53
    %v1022 = vsel %vm609, %v1019, 0
    %1024 = vmatprep.subr.mxu0 0.0
    %1025 = vmatpush1.msra.mxu0 %v1018
    %1026 = vmatprep.subr.mxu0 0.0
    %1027 = vmatpush1.msra.mxu0 0.0
    %1028 = vmatprep.subr.mxu0 0.0
    %1029 = vmatpush1.msra.mxu0 0.0
    %1030 = vmatprep.subr.mxu0 0.0
    %1031 = vmatpush1.msra.mxu0 0.0
    %1032 = vmatprep.subr.mxu0 0.0
    %1033 = vmatpush1.msra.mxu0 0.0
    %1034 = vmatprep.subr.mxu0 0.0
    %1035 = vmatpush1.msra.mxu0 0.0
    %1036 = vmatprep.subr.mxu0 0.0
    %1037 = vmatpush1.msra.mxu0 0.0
    %1038 = vmatprep.subr.mxu0 0.0
    %1039 = vmatpush1.msra.mxu0 0.0
    %1040 = vmatprep.subr.mxu0 0.0
    %1041 = vmatpush1.msra.mxu0 0.0
    %1042 = vmatprep.subr.mxu0 0.0
    %1043 = vmatpush1.msra.mxu0 0.0
    %1044 = vmatprep.subr.mxu0 0.0
    %1045 = vmatpush1.msra.mxu0 0.0
    %1046 = vmatprep.subr.mxu0 0.0
    %1047 = vmatpush1.msra.mxu0 0.0
    %1048 = vmatprep.subr.mxu0 0.0
    %1049 = vmatpush1.msra.mxu0 0.0
    %1050 = vmatprep.subr.mxu0 0.0
    %1051 = vmatpush1.msra.mxu0 0.0
    %1052 = vmatprep.subr.mxu0 0.0
    %1053 = vmatpush1.msra.mxu0 0.0
    %1054 = vmatprep.subr.mxu0 0.0
    %1055 = vmatpush1.msra.mxu0 0.0
    %1056 = vmatprep.subr.mxu0 0.0
    %1057 = vmatpush1.msra.mxu0 0.0
    %1058 = vmatprep.subr.mxu0 0.0
    %1059 = vmatpush1.msra.mxu0 0.0
    %1060 = vmatprep.subr.mxu0 0.0
    %1061 = vmatpush1.msra.mxu0 0.0
    %1062 = vmatprep.subr.mxu0 0.0
    %1063 = vmatpush1.msra.mxu0 0.0
    %1064 = vmatprep.subr.mxu0 0.0
    %1065 = vmatpush1.msra.mxu0 0.0
    %1066 = vmatprep.subr.mxu0 0.0
    %1067 = vmatpush1.msra.mxu0 0.0
    %1068 = vmatprep.subr.mxu0 0.0
    %1069 = vmatpush1.msra.mxu0 0.0
    %1070 = vmatprep.subr.mxu0 0.0
    %1071 = vmatpush1.msra.mxu0 0.0
    %1072 = vmatprep.subr.mxu0 0.0
    %1073 = vmatpush1.msra.mxu0 0.0
    %1074 = vmatprep.subr.mxu0 0.0
    %1075 = vmatpush1.msra.mxu0 0.0
    %1076 = vmatprep.subr.mxu0 0.0
    %1077 = vmatpush1.msra.mxu0 0.0
    %1078 = vmatprep.subr.mxu0 0.0
    %1079 = vmatpush1.msra.mxu0 0.0
    %1080 = vmatprep.subr.mxu0 0.0
    %1081 = vmatpush1.msra.mxu0 0.0
    %1082 = vmatprep.subr.mxu0 0.0
    %1083 = vmatpush1.msra.mxu0 0.0
    %1084 = vmatprep.subr.mxu0 0.0
    %1085 = vmatpush1.msra.mxu0 0.0
    %1086 = vmatprep.subr.mxu0 0.0
    %1087 = vmatpush1.msra.mxu0 0.0
    %1088 = vmatprep.mubr.f32.mxu0 0.0
    %1089 = vmatmul.mubr.f32.gmra.mrb[0].mxu0 %v1022
    %v1090 = vpop.f32.mrb[0].mxu0
    %v1091 = vadd.f32 %v1020, %v1090
    %v1092 = vpop.f32.mrb[0].mxu0
    %1093 = vdwg.mxu0
    %vm1094 = vcmask 1040384
    %v1095 = vsel %vm1094, %v1091, -inf
    %1096 = vmax.xlane.f32.xlu0 %v1095
    %v1097 = vpop.xlane.xlu0 %1096
    %v1098 = vld [vmem:[%s1] sm:$0x1]
    %v1099 = vsub.f32 %v1091, %v1097
    %v1100 = vmul.f32 %v1099, 1.442695
    %v1101 = vpow.pop %v1100
    %v1102 = vsub.f32 1.0, %v1098
    %v1103 = vmul.f32 %v1101, %v1102
    %v1104 = vld [vmem:[%s2] sm:$0xff]
    %v1105 = vld [vmem:[%s2 + $0x8] sm:$0xff]
    %v1106 = vld [vmem:[%s2 + $0x10] sm:$0xff]
    %v1107 = vld [vmem:[%s2 + $0x18] sm:$0xff]
    %v1108 = vld [vmem:[%s2 + $0x20] sm:$0xff]
    %v1109 = vld [vmem:[%s2 + $0x28] sm:$0xff]
    %v1110 = vld [vmem:[%s2 + $0x30] sm:$0xff]
    %v1111 = vld [vmem:[%s2 + $0x38] sm:$0xff]
    %v1112 = vld [vmem:[%s2 + $0x40] sm:$0xff]
    %v1113 = vld [vmem:[%s2 + $0x48] sm:$0xff]
    %v1114 = vld [vmem:[%s2 + $0x50] sm:$0xff]
    %v1115 = vld [vmem:[%s2 + $0x58] sm:$0xff]
    %v1116 = vld [vmem:[%s2 + $0x60] sm:$0xff]
    %v1117 = vld [vmem:[%s2 + $0x68] sm:$0xff]
    %v1118 = vld [vmem:[%s2 + $0x70] sm:$0xff]
    %v1119 = vld [vmem:[%s2 + $0x78] sm:$0xff]
    %1120 = vmatprep.subr.mxu0 0.0
    %1121 = vmatpush1.msra.mxu0 %v1104
    %1122 = vmatprep.subr.mxu0 0.0
    %1123 = vmatpush1.msra.mxu0 %v1105
    %1124 = vmatprep.subr.mxu0 0.0
    %1125 = vmatpush1.msra.mxu0 %v1106
    %1126 = vmatprep.subr.mxu0 0.0
    %1127 = vmatpush1.msra.mxu0 %v1107
    %1128 = vmatprep.subr.mxu0 0.0
    %1129 = vmatpush1.msra.mxu0 %v1108
    %1130 = vmatprep.subr.mxu0 0.0
    %1131 = vmatpush1.msra.mxu0 %v1109
    %1132 = vmatprep.subr.mxu0 0.0
    %1133 = vmatpush1.msra.mxu0 %v1110
    %1134 = vmatprep.subr.mxu0 0.0
    %1135 = vmatpush1.msra.mxu0 %v1111
    %1136 = vmatprep.subr.mxu0 0.0
    %1137 = vmatpush1.msra.mxu0 %v1112
    %1138 = vmatprep.subr.mxu0 0.0
    %1139 = vmatpush1.msra.mxu0 %v1113
    %1140 = vmatprep.subr.mxu0 0.0
    %1141 = vmatpush1.msra.mxu0 %v1114
    %1142 = vmatprep.subr.mxu0 0.0
    %1143 = vmatpush1.msra.mxu0 %v1115
    %1144 = vmatprep.subr.mxu0 0.0
    %1145 = vmatpush1.msra.mxu0 %v1116
    %1146 = vmatprep.subr.mxu0 0.0
    %1147 = vmatpush1.msra.mxu0 %v1117
    %1148 = vmatprep.subr.mxu0 0.0
    %1149 = vmatpush1.msra.mxu0 %v1118
    %1150 = vmatprep.subr.mxu0 0.0
    %1151 = vmatpush1.msra.mxu0 %v1119
    %1152 = vmatprep.subr.mxu0 0.0
    %1153 = vmatpush1.msra.mxu0 0.0
    %1154 = vmatprep.subr.mxu0 0.0
    %1155 = vmatpush1.msra.mxu0 0.0
    %1156 = vmatprep.subr.mxu0 0.0
    %1157 = vmatpush1.msra.mxu0 0.0
    %1158 = vmatprep.subr.mxu0 0.0
    %1159 = vmatpush1.msra.mxu0 0.0
    %1160 = vmatprep.subr.mxu0 0.0
    %1161 = vmatpush1.msra.mxu0 0.0
    %1162 = vmatprep.subr.mxu0 0.0
    %1163 = vmatpush1.msra.mxu0 0.0
    %1164 = vmatprep.subr.mxu0 0.0
    %1165 = vmatpush1.msra.mxu0 0.0
    %1166 = vmatprep.subr.mxu0 0.0
    %1167 = vmatpush1.msra.mxu0 0.0
    %1168 = vmatprep.subr.mxu0 0.0
    %1169 = vmatpush1.msra.mxu0 0.0
    %1170 = vmatprep.subr.mxu0 0.0
    %1171 = vmatpush1.msra.mxu0 0.0
    %1172 = vmatprep.subr.mxu0 0.0
    %1173 = vmatpush1.msra.mxu0 0.0
    %1174 = vmatprep.subr.mxu0 0.0
    %1175 = vmatpush1.msra.mxu0 0.0
    %1176 = vmatprep.subr.mxu0 0.0
    %1177 = vmatpush1.msra.mxu0 0.0
    %1178 = vmatprep.subr.mxu0 0.0
    %1179 = vmatpush1.msra.mxu0 0.0
    %1180 = vmatprep.subr.mxu0 0.0
    %1181 = vmatpush1.msra.mxu0 0.0
    %1182 = vmatprep.subr.mxu0 0.0
    %1183 = vmatpush1.msra.mxu0 0.0
    %1184 = vmatprep.mubr.f32.mxu0 0.0
    %1185 = vmatmul.mubr.f32.gmra.mrb[0].mxu0 %v1103
    %v1186 = vpop.f32.mrb[0].mxu0
    %v1187 = vadd.f32 0.0, %v1186
    %v1188 = vpop.f32.mrb[0].mxu0
    %1189 = vdwg.mxu0
    %v1190 = vrcp.pop %v1187
    %v1191 = vmul.f32 1.0, %v1190
    %v1192 = vld [vmem:[%s3] sm:$0xff]
    %v1193 = vld [vmem:[%s3 + $0x8] sm:$0xff]
    %v1195 = vsel %vm286, %v1191, 0
    %1197 = vmatprep.subr.mxu0 0.0
    %1198 = vmatpush1.msra.mxu0 %v1192
    %1199 = vmatprep.subr.mxu0 0.0
    %1200 = vmatpush1.msra.mxu0 %v1193
    %1201 = vmatprep.subr.mxu0 0.0
    %1202 = vmatpush1.msra.mxu0 0.0
    %1203 = vmatprep.subr.mxu0 0.0
    %1204 = vmatpush1.msra.mxu0 0.0
    %1205 = vmatprep.subr.mxu0 0.0
    %1206 = vmatpush1.msra.mxu0 0.0
    %1207 = vmatprep.subr.mxu0 0.0
    %1208 = vmatpush1.msra.mxu0 0.0
    %1209 = vmatprep.subr.mxu0 0.0
    %1210 = vmatpush1.msra.mxu0 0.0
    %1211 = vmatprep.subr.mxu0 0.0
    %1212 = vmatpush1.msra.mxu0 0.0
    %1213 = vmatprep.subr.mxu0 0.0
    %1214 = vmatpush1.msra.mxu0 0.0
    %1215 = vmatprep.subr.mxu0 0.0
    %1216 = vmatpush1.msra.mxu0 0.0
    %1217 = vmatprep.subr.mxu0 0.0
    %1218 = vmatpush1.msra.mxu0 0.0
    %1219 = vmatprep.subr.mxu0 0.0
    %1220 = vmatpush1.msra.mxu0 0.0
    %1221 = vmatprep.subr.mxu0 0.0
    %1222 = vmatpush1.msra.mxu0 0.0
    %1223 = vmatprep.subr.mxu0 0.0
    %1224 = vmatpush1.msra.mxu0 0.0
    %1225 = vmatprep.subr.mxu0 0.0
    %1226 = vmatpush1.msra.mxu0 0.0
    %1227 = vmatprep.subr.mxu0 0.0
    %1228 = vmatpush1.msra.mxu0 0.0
    %1229 = vmatprep.subr.mxu0 0.0
    %1230 = vmatpush1.msra.mxu0 0.0
    %1231 = vmatprep.subr.mxu0 0.0
    %1232 = vmatpush1.msra.mxu0 0.0
    %1233 = vmatprep.subr.mxu0 0.0
    %1234 = vmatpush1.msra.mxu0 0.0
    %1235 = vmatprep.subr.mxu0 0.0
    %1236 = vmatpush1.msra.mxu0 0.0
    %1237 = vmatprep.subr.mxu0 0.0
    %1238 = vmatpush1.msra.mxu0 0.0
    %1239 = vmatprep.subr.mxu0 0.0
    %1240 = vmatpush1.msra.mxu0 0.0
    %1241 = vmatprep.subr.mxu0 0.0
    %1242 = vmatpush1.msra.mxu0 0.0
    %1243 = vmatprep.subr.mxu0 0.0
    %1244 = vmatpush1.msra.mxu0 0.0
    %1245 = vmatprep.subr.mxu0 0.0
    %1246 = vmatpush1.msra.mxu0 0.0
    %1247 = vmatprep.subr.mxu0 0.0
    %1248 = vmatpush1.msra.mxu0 0.0
    %1249 = vmatprep.subr.mxu0 0.0
    %1250 = vmatpush1.msra.mxu0 0.0
    %1251 = vmatprep.subr.mxu0 0.0
    %1252 = vmatpush1.msra.mxu0 0.0
    %1253 = vmatprep.subr.mxu0 0.0
    %1254 = vmatpush1.msra.mxu0 0.0
    %1255 = vmatprep.subr.mxu0 0.0
    %1256 = vmatpush1.msra.mxu0 0.0
    %1257 = vmatprep.subr.mxu0 0.0
    %1258 = vmatpush1.msra.mxu0 0.0
    %1259 = vmatprep.subr.mxu0 0.0
    %1260 = vmatpush1.msra.mxu0 0.0
    %1261 = vmatprep.mubr.f32.mxu0 0.0
    %1262 = vmatmul.mubr.f32.gmra.mrb[0].mxu0 %v1195
    %v1263 = vpop.f32.mrb[0].mxu0
    %v1264 = vadd.f32 0.0, %v1263
    %v1265 = vpop.f32.mrb[0].mxu0
    %1266 = vdwg.mxu0
    %v1267 = vmul.f32 %v1103, %v1264
    %1268 = vst [vmem:[#allocation5] sm:$0x1] %v1267
    // Predicated region
    $region50: #{tpu_custom_call.1} parent=1 // pred_check
      _
    $region51: #{tpu_custom_call.1} parent=1 // pred_check_branch
      %1270 = sbr.rel (0) target = $region53
    $region52: #{tpu_custom_call.1} parent=1 // pred_region
      %s1272 = ssub.s32 16, 16
      %1273 = vsyncadd [#allocation3], %s1272
      %s1275 = sshll.u32 [#allocation5], 4
      %s1276 = int_to_ptr.vmem [resolvable:$true] %s1275
      %1278 = dma.vmem_to_hbm [thread:$0]  %s1276, 16, %s11, [#allocation3]
    $region53: #{tpu_custom_call.1} parent=1 // pred_fallthru
      _
    // Predicated region
    $region54: #{tpu_custom_call.1} parent=1 // pred_check
      _
    $region55: #{tpu_custom_call.1} parent=1 // pred_check_branch
      %1280 = sbr.rel (0) target = $region57
    $region56: #{tpu_custom_call.1} parent=1 // pred_region
      %1281 = dma.done [#allocation3], 16
    $region57: #{tpu_custom_call.1} parent=1 // pred_fallthru
      _
    %1282 = vsyncpa [#allocation3], 1
    %1283 = vsyncpa [#allocation4], 1

</llo_original>
